<compile_context>
chip_gen: v7x
topology: tpu7x:2x2x1
jax: 0.10.0
libtpu: 0.0.40
codegen_flags: <defaults>
</compile_context>

<pallas_src>
import functools

import jax
import jax.numpy as jnp
from jax.experimental import pallas as pl
from jax.experimental.pallas import tpu as pltpu

# ------------------------- model hyper-params (small) -------------------------
VOCAB_SIZE = 65
N_EMBD     = 64            # C
N_HEAD     = 4             # H   (head_size = C // H = 16)
N_LAYER    = 2
BLOCK_SIZE = 8             # max T
EMBED_DIM  = N_EMBD // 2   # rotary "embed_dim" -> pos_emb has 2*EMBED_DIM = C dims
BATCH      = 2
SEQ_LEN    = 8
VPAD       = 128           # lane-dense padded vocab (>= VOCAB_SIZE)


# ------------------------------ kernel helpers --------------------------------
def _layernorm(x2d, w, b, eps=1e-5):
    # x2d: (N, C) f32; w, b broadcastable to (N, C)
    mu = jnp.mean(x2d, axis=-1, keepdims=True)
    xc = x2d - mu
    var = jnp.mean(xc * xc, axis=-1, keepdims=True)
    return xc * jax.lax.rsqrt(var + eps) * w + b


# ------------------------------ fused GPT2 kernel ------------------------------
def gpt2_fused_kernel(x_ref, bias_ref,
                      ln1w_ref, ln1b_ref, wqkv_ref, wo_ref, bo_ref,
                      ln2w_ref, ln2b_ref, w1_ref, b1_ref, w2_ref, b2_ref,
                      lnfw_ref, lnfb_ref, lmw_ref, lmb_ref,
                      out_ref,
                      *, batch, seq, n_head, n_layer):
    BT, C = x_ref.shape
    B, T, H = batch, seq, n_head
    hs = C // H
    HT = H * T

    x = x_ref[...].astype(jnp.float32)          # residual stream (B*T, C), f32
    bias = bias_ref[...]                        # (HT, HT) additive causal mask
    scale = float(C) ** -0.5                    # module scales by n_embd, not head_size

    for l in range(n_layer):                    # L is tiny & static -> fully unrolled
        # ------------- attention sublayer: x = x + proj(MHA(LN1(x))) -------------
        h2d = _layernorm(x, ln1w_ref[l], ln1b_ref[l])
        qkv = jnp.dot(h2d.astype(jnp.bfloat16), wqkv_ref[l],
                      preferred_element_type=jnp.float32)        # (BT, 3C) f32
        qkv3 = qkv.reshape(B, T, 3 * C)

        def heads(base):
            # gather all heads head-major: (B, T, C)-slab -> (B, H*T, hs)
            return jnp.concatenate(
                [qkv3[:, :, base + h * hs: base + (h + 1) * hs] for h in range(H)],
                axis=1)

        qs = heads(0).astype(jnp.bfloat16)        # (B, HT, hs)
        ks = heads(C).astype(jnp.bfloat16)
        vs = heads(2 * C).astype(jnp.bfloat16)

        # one batched matmul for ALL heads; block-diagonal causal bias keeps
        # cross-head / future positions out of the softmax.
        s = jnp.einsum('bnd,bmd->bnm', qs, ks,
                       preferred_element_type=jnp.float32)        # (B, HT, HT)
        s = s * scale + bias
        m = jnp.max(s, axis=-1, keepdims=True)
        p = jnp.exp(s - m)
        denom = jnp.sum(p, axis=-1, keepdims=True)
        p = p * pl.reciprocal(denom, approx=True)                 # attn dropout: identity
        o = jnp.einsum('bnm,bmd->bnd', p.astype(jnp.bfloat16), vs,
                       preferred_element_type=jnp.float32)        # (B, HT, hs)

        # undo the head-major flattening: (B, HT, hs) -> (B, T, C) -> (BT, C)
        attn = jnp.concatenate([o[:, h * T:(h + 1) * T, :] for h in range(H)],
                               axis=-1).reshape(BT, C)
        attn = jnp.dot(attn.astype(jnp.bfloat16), wo_ref[l],
                       preferred_element_type=jnp.float32) + bo_ref[l]
        x = x + attn                                              # proj dropout: identity

        # ------------------- MLP sublayer: x = x + FFN(LN2(x)) -------------------
        hm = _layernorm(x, ln2w_ref[l], ln2b_ref[l])
        hm = jnp.dot(hm.astype(jnp.bfloat16), w1_ref[l],
                     preferred_element_type=jnp.float32) + b1_ref[l]
        hm = jnp.maximum(hm, 0.0)                                 # ReLU
        hm = jnp.dot(hm.astype(jnp.bfloat16), w2_ref[l],
                     preferred_element_type=jnp.float32) + b2_ref[l]
        x = x + hm                                                # FFN dropout: identity

    # --------------- final LayerNorm + lm_head (lane-dense, padded V) ---------------
    hf = _layernorm(x, lnfw_ref[...], lnfb_ref[...])
    logits = jnp.dot(hf.astype(jnp.bfloat16), lmw_ref[...],
                     preferred_element_type=jnp.float32) + lmb_ref[...]
    out_ref[...] = logits                       # (BT, VPAD) f32, 128-lane dense


# --------------------------------- wrapper ------------------------------------
def gpt2_pallas_forward(x2d, p, batch, seq):
    BT, C = x2d.shape
    L = p['wqkv'].shape[0]
    F = p['w1'].shape[-1]
    VP = p['lm_w'].shape[-1]
    H = N_HEAD
    HT = H * seq

    # additive block-diagonal causal bias over the head-major (H*T) axis.
    # Pure function of static (H, T) -> XLA constant-folds it at jit time.
    n_idx = jnp.arange(HT)
    head_id = n_idx // seq
    t_id = n_idx % seq
    valid = (head_id[:, None] == head_id[None, :]) & (t_id[None, :] <= t_id[:, None])
    attn_bias = jnp.where(valid, 0.0, -1e30).astype(jnp.float32)   # (HT, HT)

    def full(shape):
        nd = len(shape)
        return pl.BlockSpec(shape, lambda i, nd=nd: (0,) * nd)

    kernel = functools.partial(gpt2_fused_kernel, batch=batch, seq=seq,
                               n_head=H, n_layer=L)

    grid_spec = pltpu.PrefetchScalarGridSpec(
        num_scalar_prefetch=0,
        grid=(1,),
        in_specs=[
            full((BT, C)),                                      # residual stream
            full((HT, HT)),                                     # attention bias
            full((L, 1, C)), full((L, 1, C)),                   # ln1 w, b
            full((L, C, 3 * C)),                                # fused Wqkv (bf16)
            full((L, C, C)), full((L, 1, C)),                   # Wproj, bproj
            full((L, 1, C)), full((L, 1, C)),                   # ln2 w, b
            full((L, C, F)), full((L, 1, F)),                   # W1, b1
            full((L, F, C)), full((L, 1, C)),                   # W2, b2
            full((1, C)), full((1, C)),                         # ln_f w, b
            full((C, VP)), full((1, VP)),                       # lm_head W (bf16), b
        ],
        out_specs=full((BT, VP)),
    )
    return pl.pallas_call(
        kernel,
        out_shape=jax.ShapeDtypeStruct((BT, VP), jnp.float32),
        grid_spec=grid_spec,
        compiler_params=pltpu.CompilerParams(
            dimension_semantics=("arbitrary",)),
    )(x2d, attn_bias,
      p['ln1_w'], p['ln1_b'], p['wqkv'], p['wo'], p['bo'],
      p['ln2_w'], p['ln2_b'], p['w1'], p['b1'], p['w2'], p['b2'],
      p['lnf_w'], p['lnf_b'], p['lm_w'], p['lm_b'])


@jax.jit
def gpt2_forward(idx, params):
    """Matches GPT2.forward with targets=None; returns logits (B, T, vocab)."""
    B, T = idx.shape
    C = params['tok_emb'].shape[-1]
    # token embedding (gather stays in plain JAX glue)
    tok_emb = jnp.take(params['tok_emb'], idx, axis=0)              # (B, T, C)
    # "rotary" embedding (the module's forward is additive sinusoidal positions)
    pos = jnp.arange(T, dtype=jnp.float32)
    i = jnp.arange(EMBED_DIM, dtype=jnp.float32)
    angles = pos[:, None] / (10000.0 ** (2.0 * i / EMBED_DIM))      # (T, EMBED_DIM)
    pos_emb = jnp.concatenate([jnp.sin(angles), jnp.cos(angles)], axis=-1)  # (T, C)
    x2d = (tok_emb + pos_emb[None, :, :]).reshape(B * T, C).astype(jnp.float32)

    logits_pad = gpt2_pallas_forward(x2d, params, B, T)             # (B*T, VPAD)
    logits = logits_pad.reshape(B, T, VPAD)[:, :, :VOCAB_SIZE]
    return logits
    # TODO(synk): cross-entropy loss (targets path) and multinomial sampling in
    # generate() are left to plain JAX / host code; not part of the hot path.


# ------------------------------ parameter init ---------------------------------
def init_params(key):
    C, V, L, F = N_EMBD, VOCAB_SIZE, N_LAYER, 4 * N_EMBD
    ks = jax.random.split(key, 8)

    def nrm(k, shape, scale=0.02, dtype=jnp.float32):
        return (scale * jax.random.normal(k, shape)).astype(dtype)

    # fused QKV weight: (L, C, 3C), bf16 for the MXU (f32 accumulation at the dot)
    wq = nrm(ks[1], (L, C, C))
    wk = nrm(ks[2], (L, C, C))
    wv = nrm(ks[3], (L, C, C))
    wqkv = jnp.concatenate([wq, wk, wv], axis=-1).astype(jnp.bfloat16)

    # lm_head padded to a lane-dense 128-wide output; extra columns are zero.
    lm_w = jnp.pad(nrm(ks[7], (C, V)), ((0, 0), (0, VPAD - V))).astype(jnp.bfloat16)
    lm_b = jnp.zeros((1, VPAD), jnp.float32)

    return {
        'tok_emb': nrm(ks[0], (V, C)),
        # per-layer stacked weights (all layers resident in VMEM)
        'ln1_w': jnp.ones((L, 1, C), jnp.float32),
        'ln1_b': jnp.zeros((L, 1, C), jnp.float32),
        'wqkv': wqkv,
        'wo': nrm(ks[4], (L, C, C), dtype=jnp.bfloat16),
        'bo': jnp.zeros((L, 1, C), jnp.float32),
        'ln2_w': jnp.ones((L, 1, C), jnp.float32),
        'ln2_b': jnp.zeros((L, 1, C), jnp.float32),
        'w1': nrm(ks[5], (L, C, F), dtype=jnp.bfloat16),
        'b1': jnp.zeros((L, 1, F), jnp.float32),
        'w2': nrm(ks[6], (L, F, C), dtype=jnp.bfloat16),
        'b2': jnp.zeros((L, 1, C), jnp.float32),
        # final LN + lm_head
        'lnf_w': jnp.ones((1, C), jnp.float32),
        'lnf_b': jnp.zeros((1, C), jnp.float32),
        'lm_w': lm_w,
        'lm_b': lm_b,
    }


if __name__ == "__main__":
    assert SEQ_LEN <= BLOCK_SIZE
    key = jax.random.PRNGKey(0)
    pkey, ikey = jax.random.split(key)
    params = init_params(pkey)
    idx = jax.random.randint(ikey, (BATCH, SEQ_LEN), 0, VOCAB_SIZE, dtype=jnp.int32)

    logits = gpt2_forward(idx, params)
    logits = jax.block_until_ready(logits)

    assert logits.shape == (BATCH, SEQ_LEN, VOCAB_SIZE), logits.shape
    assert bool(jnp.all(jnp.isfinite(logits)))
    print("KERNEL_OK")
</pallas_src>

<mosaic_0001>
module attributes {stable_mosaic.version = 11 : i64} {
  func.func @gpt2_fused_kernel(%arg0: i32, %arg1: memref<16x64xf32, #tpu.memory_space<vmem>>, %arg2: memref<32x32xf32, #tpu.memory_space<vmem>>, %arg3: memref<2x1x64xf32, #tpu.memory_space<vmem>>, %arg4: memref<2x1x64xf32, #tpu.memory_space<vmem>>, %arg5: memref<2x64x192xbf16, #tpu.memory_space<vmem>>, %arg6: memref<2x64x64xbf16, #tpu.memory_space<vmem>>, %arg7: memref<2x1x64xf32, #tpu.memory_space<vmem>>, %arg8: memref<2x1x64xf32, #tpu.memory_space<vmem>>, %arg9: memref<2x1x64xf32, #tpu.memory_space<vmem>>, %arg10: memref<2x64x256xbf16, #tpu.memory_space<vmem>>, %arg11: memref<2x1x256xf32, #tpu.memory_space<vmem>>, %arg12: memref<2x256x64xbf16, #tpu.memory_space<vmem>>, %arg13: memref<2x1x64xf32, #tpu.memory_space<vmem>>, %arg14: memref<1x64xf32, #tpu.memory_space<vmem>>, %arg15: memref<1x64xf32, #tpu.memory_space<vmem>>, %arg16: memref<64x128xbf16, #tpu.memory_space<vmem>>, %arg17: memref<1x128xf32, #tpu.memory_space<vmem>>, %arg18: memref<16x128xf32, #tpu.memory_space<vmem>>) attributes {dimension_semantics = [#tpu.dimension_semantics<arbitrary>], iteration_bounds = array<i64: 1>, scalar_prefetch = 0 : i64, scratch_operands = 0 : i64, tpu.core_type = #tpu.core_type<tc>, window_params = [{pipeline_mode = #tpu.pipeline_mode<synchronous>, transform_indices = @transform_0, window_bounds = array<i64: 16, 64>}, {pipeline_mode = #tpu.pipeline_mode<synchronous>, transform_indices = @transform_1, window_bounds = array<i64: 32, 32>}, {pipeline_mode = #tpu.pipeline_mode<synchronous>, transform_indices = @transform_2, window_bounds = array<i64: 2, 1, 64>}, {pipeline_mode = #tpu.pipeline_mode<synchronous>, transform_indices = @transform_3, window_bounds = array<i64: 2, 1, 64>}, {pipeline_mode = #tpu.pipeline_mode<synchronous>, transform_indices = @transform_4, window_bounds = array<i64: 2, 64, 192>}, {pipeline_mode = #tpu.pipeline_mode<synchronous>, transform_indices = @transform_5, window_bounds = array<i64: 2, 64, 64>}, {pipeline_mode = #tpu.pipeline_mode<synchronous>, transform_indices = @transform_6, window_bounds = array<i64: 2, 1, 64>}, {pipeline_mode = #tpu.pipeline_mode<synchronous>, transform_indices = @transform_7, window_bounds = array<i64: 2, 1, 64>}, {pipeline_mode = #tpu.pipeline_mode<synchronous>, transform_indices = @transform_8, window_bounds = array<i64: 2, 1, 64>}, {pipeline_mode = #tpu.pipeline_mode<synchronous>, transform_indices = @transform_9, window_bounds = array<i64: 2, 64, 256>}, {pipeline_mode = #tpu.pipeline_mode<synchronous>, transform_indices = @transform_10, window_bounds = array<i64: 2, 1, 256>}, {pipeline_mode = #tpu.pipeline_mode<synchronous>, transform_indices = @transform_11, window_bounds = array<i64: 2, 256, 64>}, {pipeline_mode = #tpu.pipeline_mode<synchronous>, transform_indices = @transform_12, window_bounds = array<i64: 2, 1, 64>}, {pipeline_mode = #tpu.pipeline_mode<synchronous>, transform_indices = @transform_13, window_bounds = array<i64: 1, 64>}, {pipeline_mode = #tpu.pipeline_mode<synchronous>, transform_indices = @transform_14, window_bounds = array<i64: 1, 64>}, {pipeline_mode = #tpu.pipeline_mode<synchronous>, transform_indices = @transform_15, window_bounds = array<i64: 64, 128>}, {pipeline_mode = #tpu.pipeline_mode<synchronous>, transform_indices = @transform_16, window_bounds = array<i64: 1, 128>}, {pipeline_mode = #tpu.pipeline_mode<synchronous>, transform_indices = @transform_17, window_bounds = array<i64: 16, 128>}]} {
    %c0 = arith.constant 0 : index
    %c0_0 = arith.constant 0 : index
    %0 = vector.load %arg1[%c0, %c0_0] : memref<16x64xf32, #tpu.memory_space<vmem>>, vector<16x64xf32>
    %c0_1 = arith.constant 0 : index
    %c0_2 = arith.constant 0 : index
    %1 = vector.load %arg2[%c0_1, %c0_2] : memref<32x32xf32, #tpu.memory_space<vmem>>, vector<32x32xf32>
    %c0_3 = arith.constant 0 : index
    %c0_4 = arith.constant 0 : index
    %c0_5 = arith.constant 0 : index
    %2 = vector.load %arg3[%c0_3, %c0_4, %c0_5] : memref<2x1x64xf32, #tpu.memory_space<vmem>>, vector<1x1x64xf32>
    %3 = vector.shape_cast %2 : vector<1x1x64xf32> to vector<1x64xf32>
    %c0_6 = arith.constant 0 : index
    %c0_7 = arith.constant 0 : index
    %c0_8 = arith.constant 0 : index
    %4 = vector.load %arg4[%c0_6, %c0_7, %c0_8] : memref<2x1x64xf32, #tpu.memory_space<vmem>>, vector<1x1x64xf32>
    %5 = vector.shape_cast %4 : vector<1x1x64xf32> to vector<1x64xf32>
    %cst = arith.constant dense<0.000000e+00> : vector<16xf32>
    %6 = vector.multi_reduction <add>, %0, %cst [1] : vector<16x64xf32> to vector<16xf32>
    %7 = vector.shape_cast %6 : vector<16xf32> to vector<16x1xf32>
    %cst_9 = arith.constant 6.400000e+01 : f32
    %8 = vector.broadcast %cst_9 : f32 to vector<16x1xf32>
    %9 = arith.divf %7, %8 : vector<16x1xf32>
    %10 = vector.broadcast %9 : vector<16x1xf32> to vector<16x64xf32>
    %11 = arith.subf %0, %10 : vector<16x64xf32>
    %12 = arith.mulf %11, %11 : vector<16x64xf32>
    %cst_10 = arith.constant dense<0.000000e+00> : vector<16xf32>
    %13 = vector.multi_reduction <add>, %12, %cst_10 [1] : vector<16x64xf32> to vector<16xf32>
    %14 = vector.shape_cast %13 : vector<16xf32> to vector<16x1xf32>
    %cst_11 = arith.constant 6.400000e+01 : f32
    %15 = vector.broadcast %cst_11 : f32 to vector<16x1xf32>
    %16 = arith.divf %14, %15 : vector<16x1xf32>
    %cst_12 = arith.constant 9.99999974E-6 : f32
    %17 = vector.broadcast %cst_12 : f32 to vector<16x1xf32>
    %18 = arith.addf %16, %17 : vector<16x1xf32>
    %19 = math.rsqrt %18 : vector<16x1xf32>
    %20 = vector.broadcast %19 : vector<16x1xf32> to vector<16x64xf32>
    %21 = arith.mulf %11, %20 : vector<16x64xf32>
    %22 = vector.broadcast %3 : vector<1x64xf32> to vector<16x64xf32>
    %23 = arith.mulf %21, %22 : vector<16x64xf32>
    %24 = vector.broadcast %5 : vector<1x64xf32> to vector<16x64xf32>
    %25 = arith.addf %23, %24 : vector<16x64xf32>
    %26 = arith.truncf %25 : vector<16x64xf32> to vector<16x64xbf16>
    %c0_13 = arith.constant 0 : index
    %c0_14 = arith.constant 0 : index
    %c0_15 = arith.constant 0 : index
    %27 = vector.load %arg5[%c0_13, %c0_14, %c0_15] : memref<2x64x192xbf16, #tpu.memory_space<vmem>>, vector<1x64x192xbf16>
    %28 = vector.shape_cast %27 : vector<1x64x192xbf16> to vector<64x192xbf16>
    %cst_16 = arith.constant dense<0.000000e+00> : vector<16x192xf32>
    %29 = tpu.matmul %26, %28, %cst_16 {dimension_numbers = #tpu.dot_dimension_numbers<[1], [0], [0], [1], [0, 0, 1, 1], [], []>} : vector<16x64xbf16>, vector<64x192xbf16>, vector<16x192xf32> -> vector<16x192xf32>
    %30 = vector.shape_cast %29 : vector<16x192xf32> to vector<2x8x192xf32>
    %31 = vector.extract_strided_slice %30 {offsets = [0, 0, 0], sizes = [2, 8, 16], strides = [1, 1, 1]} : vector<2x8x192xf32> to vector<2x8x16xf32>
    %32 = vector.extract_strided_slice %30 {offsets = [0, 0, 16], sizes = [2, 8, 16], strides = [1, 1, 1]} : vector<2x8x192xf32> to vector<2x8x16xf32>
    %33 = vector.extract_strided_slice %30 {offsets = [0, 0, 32], sizes = [2, 8, 16], strides = [1, 1, 1]} : vector<2x8x192xf32> to vector<2x8x16xf32>
    %34 = vector.extract_strided_slice %30 {offsets = [0, 0, 48], sizes = [2, 8, 16], strides = [1, 1, 1]} : vector<2x8x192xf32> to vector<2x8x16xf32>
    %35 = tpu.concatenate %31, %32, %33, %34 in 1 : vector<2x8x16xf32>, vector<2x8x16xf32>, vector<2x8x16xf32>, vector<2x8x16xf32> -> vector<2x32x16xf32>
    %36 = arith.truncf %35 : vector<2x32x16xf32> to vector<2x32x16xbf16>
    %37 = vector.extract_strided_slice %30 {offsets = [0, 0, 64], sizes = [2, 8, 16], strides = [1, 1, 1]} : vector<2x8x192xf32> to vector<2x8x16xf32>
    %38 = vector.extract_strided_slice %30 {offsets = [0, 0, 80], sizes = [2, 8, 16], strides = [1, 1, 1]} : vector<2x8x192xf32> to vector<2x8x16xf32>
    %39 = vector.extract_strided_slice %30 {offsets = [0, 0, 96], sizes = [2, 8, 16], strides = [1, 1, 1]} : vector<2x8x192xf32> to vector<2x8x16xf32>
    %40 = vector.extract_strided_slice %30 {offsets = [0, 0, 112], sizes = [2, 8, 16], strides = [1, 1, 1]} : vector<2x8x192xf32> to vector<2x8x16xf32>
    %41 = tpu.concatenate %37, %38, %39, %40 in 1 : vector<2x8x16xf32>, vector<2x8x16xf32>, vector<2x8x16xf32>, vector<2x8x16xf32> -> vector<2x32x16xf32>
    %42 = arith.truncf %41 : vector<2x32x16xf32> to vector<2x32x16xbf16>
    %43 = vector.extract_strided_slice %30 {offsets = [0, 0, 128], sizes = [2, 8, 16], strides = [1, 1, 1]} : vector<2x8x192xf32> to vector<2x8x16xf32>
    %44 = vector.extract_strided_slice %30 {offsets = [0, 0, 144], sizes = [2, 8, 16], strides = [1, 1, 1]} : vector<2x8x192xf32> to vector<2x8x16xf32>
    %45 = vector.extract_strided_slice %30 {offsets = [0, 0, 160], sizes = [2, 8, 16], strides = [1, 1, 1]} : vector<2x8x192xf32> to vector<2x8x16xf32>
    %46 = vector.extract_strided_slice %30 {offsets = [0, 0, 176], sizes = [2, 8, 16], strides = [1, 1, 1]} : vector<2x8x192xf32> to vector<2x8x16xf32>
    %47 = tpu.concatenate %43, %44, %45, %46 in 1 : vector<2x8x16xf32>, vector<2x8x16xf32>, vector<2x8x16xf32>, vector<2x8x16xf32> -> vector<2x32x16xf32>
    %48 = arith.truncf %47 : vector<2x32x16xf32> to vector<2x32x16xbf16>
    "tpu.trace_start"() <{level = 10 : i32, message = "bnd,bmd->bnm"}> : () -> ()
    %cst_17 = arith.constant dense<0.000000e+00> : vector<2x32x32xf32>
    %49 = tpu.matmul %36, %42, %cst_17 {dimension_numbers = #tpu.dot_dimension_numbers<[2], [2], [1], [1], [0, 0, 0, 1, 1, 1], [0], [0]>} : vector<2x32x16xbf16>, vector<2x32x16xbf16>, vector<2x32x32xf32> -> vector<2x32x32xf32>
    "tpu.trace_stop"() : () -> ()
    %cst_18 = arith.constant 1.250000e-01 : f32
    %50 = vector.broadcast %cst_18 : f32 to vector<2x32x32xf32>
    %51 = arith.mulf %49, %50 : vector<2x32x32xf32>
    %52 = vector.shape_cast %1 : vector<32x32xf32> to vector<1x32x32xf32>
    %53 = vector.broadcast %52 : vector<1x32x32xf32> to vector<2x32x32xf32>
    %54 = arith.addf %51, %53 : vector<2x32x32xf32>
    %cst_19 = arith.constant dense<0xFF800000> : vector<2x32xf32>
    %55 = vector.multi_reduction <maximumf>, %54, %cst_19 [2] : vector<2x32x32xf32> to vector<2x32xf32>
    %56 = vector.shape_cast %55 : vector<2x32xf32> to vector<2x32x1xf32>
    %57 = vector.broadcast %56 : vector<2x32x1xf32> to vector<2x32x32xf32>
    %58 = arith.subf %54, %57 : vector<2x32x32xf32>
    %59 = math.exp %58 : vector<2x32x32xf32>
    %cst_20 = arith.constant dense<0.000000e+00> : vector<2x32xf32>
    %60 = vector.multi_reduction <add>, %59, %cst_20 [2] : vector<2x32x32xf32> to vector<2x32xf32>
    %61 = vector.shape_cast %60 : vector<2x32xf32> to vector<2x32x1xf32>
    %62 = tpu.reciprocal %61 {approx = true} : vector<2x32x1xf32> -> vector<2x32x1xf32>
    %63 = vector.broadcast %62 : vector<2x32x1xf32> to vector<2x32x32xf32>
    %64 = arith.mulf %59, %63 : vector<2x32x32xf32>
    %65 = arith.truncf %64 : vector<2x32x32xf32> to vector<2x32x32xbf16>
    "tpu.trace_start"() <{level = 10 : i32, message = "bnm,bmd->bnd"}> : () -> ()
    %cst_21 = arith.constant dense<0.000000e+00> : vector<2x32x16xf32>
    %66 = tpu.matmul %65, %48, %cst_21 {dimension_numbers = #tpu.dot_dimension_numbers<[2], [1], [1], [2], [0, 0, 0, 1, 1, 2], [0], [0]>} : vector<2x32x32xbf16>, vector<2x32x16xbf16>, vector<2x32x16xf32> -> vector<2x32x16xf32>
    "tpu.trace_stop"() : () -> ()
    %67 = vector.extract_strided_slice %66 {offsets = [0, 0, 0], sizes = [2, 8, 16], strides = [1, 1, 1]} : vector<2x32x16xf32> to vector<2x8x16xf32>
    %68 = vector.extract_strided_slice %66 {offsets = [0, 8, 0], sizes = [2, 8, 16], strides = [1, 1, 1]} : vector<2x32x16xf32> to vector<2x8x16xf32>
    %69 = vector.extract_strided_slice %66 {offsets = [0, 16, 0], sizes = [2, 8, 16], strides = [1, 1, 1]} : vector<2x32x16xf32> to vector<2x8x16xf32>
    %70 = vector.extract_strided_slice %66 {offsets = [0, 24, 0], sizes = [2, 8, 16], strides = [1, 1, 1]} : vector<2x32x16xf32> to vector<2x8x16xf32>
    %71 = tpu.concatenate %67, %68, %69, %70 in 2 : vector<2x8x16xf32>, vector<2x8x16xf32>, vector<2x8x16xf32>, vector<2x8x16xf32> -> vector<2x8x64xf32>
    %72 = vector.shape_cast %71 : vector<2x8x64xf32> to vector<16x64xf32>
    %73 = arith.truncf %72 : vector<16x64xf32> to vector<16x64xbf16>
    %c0_22 = arith.constant 0 : index
    %c0_23 = arith.constant 0 : index
    %c0_24 = arith.constant 0 : index
    %74 = vector.load %arg6[%c0_22, %c0_23, %c0_24] : memref<2x64x64xbf16, #tpu.memory_space<vmem>>, vector<1x64x64xbf16>
    %75 = vector.shape_cast %74 : vector<1x64x64xbf16> to vector<64x64xbf16>
    %cst_25 = arith.constant dense<0.000000e+00> : vector<16x64xf32>
    %76 = tpu.matmul %73, %75, %cst_25 {dimension_numbers = #tpu.dot_dimension_numbers<[1], [0], [0], [1], [0, 0, 1, 1], [], []>} : vector<16x64xbf16>, vector<64x64xbf16>, vector<16x64xf32> -> vector<16x64xf32>
    %c0_26 = arith.constant 0 : index
    %c0_27 = arith.constant 0 : index
    %c0_28 = arith.constant 0 : index
    %77 = vector.load %arg7[%c0_26, %c0_27, %c0_28] : memref<2x1x64xf32, #tpu.memory_space<vmem>>, vector<1x1x64xf32>
    %78 = vector.shape_cast %77 : vector<1x1x64xf32> to vector<1x64xf32>
    %79 = vector.broadcast %78 : vector<1x64xf32> to vector<16x64xf32>
    %80 = arith.addf %76, %79 : vector<16x64xf32>
    %81 = arith.addf %0, %80 : vector<16x64xf32>
    %c0_29 = arith.constant 0 : index
    %c0_30 = arith.constant 0 : index
    %c0_31 = arith.constant 0 : index
    %82 = vector.load %arg8[%c0_29, %c0_30, %c0_31] : memref<2x1x64xf32, #tpu.memory_space<vmem>>, vector<1x1x64xf32>
    %83 = vector.shape_cast %82 : vector<1x1x64xf32> to vector<1x64xf32>
    %c0_32 = arith.constant 0 : index
    %c0_33 = arith.constant 0 : index
    %c0_34 = arith.constant 0 : index
    %84 = vector.load %arg9[%c0_32, %c0_33, %c0_34] : memref<2x1x64xf32, #tpu.memory_space<vmem>>, vector<1x1x64xf32>
    %85 = vector.shape_cast %84 : vector<1x1x64xf32> to vector<1x64xf32>
    %cst_35 = arith.constant dense<0.000000e+00> : vector<16xf32>
    %86 = vector.multi_reduction <add>, %81, %cst_35 [1] : vector<16x64xf32> to vector<16xf32>
    %87 = vector.shape_cast %86 : vector<16xf32> to vector<16x1xf32>
    %cst_36 = arith.constant 6.400000e+01 : f32
    %88 = vector.broadcast %cst_36 : f32 to vector<16x1xf32>
    %89 = arith.divf %87, %88 : vector<16x1xf32>
    %90 = vector.broadcast %89 : vector<16x1xf32> to vector<16x64xf32>
    %91 = arith.subf %81, %90 : vector<16x64xf32>
    %92 = arith.mulf %91, %91 : vector<16x64xf32>
    %cst_37 = arith.constant dense<0.000000e+00> : vector<16xf32>
    %93 = vector.multi_reduction <add>, %92, %cst_37 [1] : vector<16x64xf32> to vector<16xf32>
    %94 = vector.shape_cast %93 : vector<16xf32> to vector<16x1xf32>
    %cst_38 = arith.constant 6.400000e+01 : f32
    %95 = vector.broadcast %cst_38 : f32 to vector<16x1xf32>
    %96 = arith.divf %94, %95 : vector<16x1xf32>
    %cst_39 = arith.constant 9.99999974E-6 : f32
    %97 = vector.broadcast %cst_39 : f32 to vector<16x1xf32>
    %98 = arith.addf %96, %97 : vector<16x1xf32>
    %99 = math.rsqrt %98 : vector<16x1xf32>
    %100 = vector.broadcast %99 : vector<16x1xf32> to vector<16x64xf32>
    %101 = arith.mulf %91, %100 : vector<16x64xf32>
    %102 = vector.broadcast %83 : vector<1x64xf32> to vector<16x64xf32>
    %103 = arith.mulf %101, %102 : vector<16x64xf32>
    %104 = vector.broadcast %85 : vector<1x64xf32> to vector<16x64xf32>
    %105 = arith.addf %103, %104 : vector<16x64xf32>
    %106 = arith.truncf %105 : vector<16x64xf32> to vector<16x64xbf16>
    %c0_40 = arith.constant 0 : index
    %c0_41 = arith.constant 0 : index
    %c0_42 = arith.constant 0 : index
    %107 = vector.load %arg10[%c0_40, %c0_41, %c0_42] : memref<2x64x256xbf16, #tpu.memory_space<vmem>>, vector<1x64x256xbf16>
    %108 = vector.shape_cast %107 : vector<1x64x256xbf16> to vector<64x256xbf16>
    %cst_43 = arith.constant dense<0.000000e+00> : vector<16x256xf32>
    %109 = tpu.matmul %106, %108, %cst_43 {dimension_numbers = #tpu.dot_dimension_numbers<[1], [0], [0], [1], [0, 0, 1, 1], [], []>} : vector<16x64xbf16>, vector<64x256xbf16>, vector<16x256xf32> -> vector<16x256xf32>
    %c0_44 = arith.constant 0 : index
    %c0_45 = arith.constant 0 : index
    %c0_46 = arith.constant 0 : index
    %110 = vector.load %arg11[%c0_44, %c0_45, %c0_46] : memref<2x1x256xf32, #tpu.memory_space<vmem>>, vector<1x1x256xf32>
    %111 = vector.shape_cast %110 : vector<1x1x256xf32> to vector<1x256xf32>
    %112 = vector.broadcast %111 : vector<1x256xf32> to vector<16x256xf32>
    %113 = arith.addf %109, %112 : vector<16x256xf32>
    %cst_47 = arith.constant 0.000000e+00 : f32
    %114 = vector.broadcast %cst_47 : f32 to vector<16x256xf32>
    %115 = arith.maximumf %113, %114 : vector<16x256xf32>
    %116 = arith.truncf %115 : vector<16x256xf32> to vector<16x256xbf16>
    %c0_48 = arith.constant 0 : index
    %c0_49 = arith.constant 0 : index
    %c0_50 = arith.constant 0 : index
    %117 = vector.load %arg12[%c0_48, %c0_49, %c0_50] : memref<2x256x64xbf16, #tpu.memory_space<vmem>>, vector<1x256x64xbf16>
    %118 = vector.shape_cast %117 : vector<1x256x64xbf16> to vector<256x64xbf16>
    %cst_51 = arith.constant dense<0.000000e+00> : vector<16x64xf32>
    %119 = tpu.matmul %116, %118, %cst_51 {dimension_numbers = #tpu.dot_dimension_numbers<[1], [0], [0], [1], [0, 0, 1, 1], [], []>} : vector<16x256xbf16>, vector<256x64xbf16>, vector<16x64xf32> -> vector<16x64xf32>
    %c0_52 = arith.constant 0 : index
    %c0_53 = arith.constant 0 : index
    %c0_54 = arith.constant 0 : index
    %120 = vector.load %arg13[%c0_52, %c0_53, %c0_54] : memref<2x1x64xf32, #tpu.memory_space<vmem>>, vector<1x1x64xf32>
    %121 = vector.shape_cast %120 : vector<1x1x64xf32> to vector<1x64xf32>
    %122 = vector.broadcast %121 : vector<1x64xf32> to vector<16x64xf32>
    %123 = arith.addf %119, %122 : vector<16x64xf32>
    %124 = arith.addf %81, %123 : vector<16x64xf32>
    %c1 = arith.constant 1 : index
    %c0_55 = arith.constant 0 : index
    %c0_56 = arith.constant 0 : index
    %125 = vector.load %arg3[%c1, %c0_55, %c0_56] : memref<2x1x64xf32, #tpu.memory_space<vmem>>, vector<1x1x64xf32>
    %126 = vector.shape_cast %125 : vector<1x1x64xf32> to vector<1x64xf32>
    %c1_57 = arith.constant 1 : index
    %c0_58 = arith.constant 0 : index
    %c0_59 = arith.constant 0 : index
    %127 = vector.load %arg4[%c1_57, %c0_58, %c0_59] : memref<2x1x64xf32, #tpu.memory_space<vmem>>, vector<1x1x64xf32>
    %128 = vector.shape_cast %127 : vector<1x1x64xf32> to vector<1x64xf32>
    %cst_60 = arith.constant dense<0.000000e+00> : vector<16xf32>
    %129 = vector.multi_reduction <add>, %124, %cst_60 [1] : vector<16x64xf32> to vector<16xf32>
    %130 = vector.shape_cast %129 : vector<16xf32> to vector<16x1xf32>
    %cst_61 = arith.constant 6.400000e+01 : f32
    %131 = vector.broadcast %cst_61 : f32 to vector<16x1xf32>
    %132 = arith.divf %130, %131 : vector<16x1xf32>
    %133 = vector.broadcast %132 : vector<16x1xf32> to vector<16x64xf32>
    %134 = arith.subf %124, %133 : vector<16x64xf32>
    %135 = arith.mulf %134, %134 : vector<16x64xf32>
    %cst_62 = arith.constant dense<0.000000e+00> : vector<16xf32>
    %136 = vector.multi_reduction <add>, %135, %cst_62 [1] : vector<16x64xf32> to vector<16xf32>
    %137 = vector.shape_cast %136 : vector<16xf32> to vector<16x1xf32>
    %cst_63 = arith.constant 6.400000e+01 : f32
    %138 = vector.broadcast %cst_63 : f32 to vector<16x1xf32>
    %139 = arith.divf %137, %138 : vector<16x1xf32>
    %cst_64 = arith.constant 9.99999974E-6 : f32
    %140 = vector.broadcast %cst_64 : f32 to vector<16x1xf32>
    %141 = arith.addf %139, %140 : vector<16x1xf32>
    %142 = math.rsqrt %141 : vector<16x1xf32>
    %143 = vector.broadcast %142 : vector<16x1xf32> to vector<16x64xf32>
    %144 = arith.mulf %134, %143 : vector<16x64xf32>
    %145 = vector.broadcast %126 : vector<1x64xf32> to vector<16x64xf32>
    %146 = arith.mulf %144, %145 : vector<16x64xf32>
    %147 = vector.broadcast %128 : vector<1x64xf32> to vector<16x64xf32>
    %148 = arith.addf %146, %147 : vector<16x64xf32>
    %149 = arith.truncf %148 : vector<16x64xf32> to vector<16x64xbf16>
    %c1_65 = arith.constant 1 : index
    %c0_66 = arith.constant 0 : index
    %c0_67 = arith.constant 0 : index
    %150 = vector.load %arg5[%c1_65, %c0_66, %c0_67] : memref<2x64x192xbf16, #tpu.memory_space<vmem>>, vector<1x64x192xbf16>
    %151 = vector.shape_cast %150 : vector<1x64x192xbf16> to vector<64x192xbf16>
    %cst_68 = arith.constant dense<0.000000e+00> : vector<16x192xf32>
    %152 = tpu.matmul %149, %151, %cst_68 {dimension_numbers = #tpu.dot_dimension_numbers<[1], [0], [0], [1], [0, 0, 1, 1], [], []>} : vector<16x64xbf16>, vector<64x192xbf16>, vector<16x192xf32> -> vector<16x192xf32>
    %153 = vector.shape_cast %152 : vector<16x192xf32> to vector<2x8x192xf32>
    %154 = vector.extract_strided_slice %153 {offsets = [0, 0, 0], sizes = [2, 8, 16], strides = [1, 1, 1]} : vector<2x8x192xf32> to vector<2x8x16xf32>
    %155 = vector.extract_strided_slice %153 {offsets = [0, 0, 16], sizes = [2, 8, 16], strides = [1, 1, 1]} : vector<2x8x192xf32> to vector<2x8x16xf32>
    %156 = vector.extract_strided_slice %153 {offsets = [0, 0, 32], sizes = [2, 8, 16], strides = [1, 1, 1]} : vector<2x8x192xf32> to vector<2x8x16xf32>
    %157 = vector.extract_strided_slice %153 {offsets = [0, 0, 48], sizes = [2, 8, 16], strides = [1, 1, 1]} : vector<2x8x192xf32> to vector<2x8x16xf32>
    %158 = tpu.concatenate %154, %155, %156, %157 in 1 : vector<2x8x16xf32>, vector<2x8x16xf32>, vector<2x8x16xf32>, vector<2x8x16xf32> -> vector<2x32x16xf32>
    %159 = arith.truncf %158 : vector<2x32x16xf32> to vector<2x32x16xbf16>
    %160 = vector.extract_strided_slice %153 {offsets = [0, 0, 64], sizes = [2, 8, 16], strides = [1, 1, 1]} : vector<2x8x192xf32> to vector<2x8x16xf32>
    %161 = vector.extract_strided_slice %153 {offsets = [0, 0, 80], sizes = [2, 8, 16], strides = [1, 1, 1]} : vector<2x8x192xf32> to vector<2x8x16xf32>
    %162 = vector.extract_strided_slice %153 {offsets = [0, 0, 96], sizes = [2, 8, 16], strides = [1, 1, 1]} : vector<2x8x192xf32> to vector<2x8x16xf32>
    %163 = vector.extract_strided_slice %153 {offsets = [0, 0, 112], sizes = [2, 8, 16], strides = [1, 1, 1]} : vector<2x8x192xf32> to vector<2x8x16xf32>
    %164 = tpu.concatenate %160, %161, %162, %163 in 1 : vector<2x8x16xf32>, vector<2x8x16xf32>, vector<2x8x16xf32>, vector<2x8x16xf32> -> vector<2x32x16xf32>
    %165 = arith.truncf %164 : vector<2x32x16xf32> to vector<2x32x16xbf16>
    %166 = vector.extract_strided_slice %153 {offsets = [0, 0, 128], sizes = [2, 8, 16], strides = [1, 1, 1]} : vector<2x8x192xf32> to vector<2x8x16xf32>
    %167 = vector.extract_strided_slice %153 {offsets = [0, 0, 144], sizes = [2, 8, 16], strides = [1, 1, 1]} : vector<2x8x192xf32> to vector<2x8x16xf32>
    %168 = vector.extract_strided_slice %153 {offsets = [0, 0, 160], sizes = [2, 8, 16], strides = [1, 1, 1]} : vector<2x8x192xf32> to vector<2x8x16xf32>
    %169 = vector.extract_strided_slice %153 {offsets = [0, 0, 176], sizes = [2, 8, 16], strides = [1, 1, 1]} : vector<2x8x192xf32> to vector<2x8x16xf32>
    %170 = tpu.concatenate %166, %167, %168, %169 in 1 : vector<2x8x16xf32>, vector<2x8x16xf32>, vector<2x8x16xf32>, vector<2x8x16xf32> -> vector<2x32x16xf32>
    %171 = arith.truncf %170 : vector<2x32x16xf32> to vector<2x32x16xbf16>
    "tpu.trace_start"() <{level = 10 : i32, message = "bnd,bmd->bnm"}> : () -> ()
    %cst_69 = arith.constant dense<0.000000e+00> : vector<2x32x32xf32>
    %172 = tpu.matmul %159, %165, %cst_69 {dimension_numbers = #tpu.dot_dimension_numbers<[2], [2], [1], [1], [0, 0, 0, 1, 1, 1], [0], [0]>} : vector<2x32x16xbf16>, vector<2x32x16xbf16>, vector<2x32x32xf32> -> vector<2x32x32xf32>
    "tpu.trace_stop"() : () -> ()
    %cst_70 = arith.constant 1.250000e-01 : f32
    %173 = vector.broadcast %cst_70 : f32 to vector<2x32x32xf32>
    %174 = arith.mulf %172, %173 : vector<2x32x32xf32>
    %175 = vector.shape_cast %1 : vector<32x32xf32> to vector<1x32x32xf32>
    %176 = vector.broadcast %175 : vector<1x32x32xf32> to vector<2x32x32xf32>
    %177 = arith.addf %174, %176 : vector<2x32x32xf32>
    %cst_71 = arith.constant dense<0xFF800000> : vector<2x32xf32>
    %178 = vector.multi_reduction <maximumf>, %177, %cst_71 [2] : vector<2x32x32xf32> to vector<2x32xf32>
    %179 = vector.shape_cast %178 : vector<2x32xf32> to vector<2x32x1xf32>
    %180 = vector.broadcast %179 : vector<2x32x1xf32> to vector<2x32x32xf32>
    %181 = arith.subf %177, %180 : vector<2x32x32xf32>
    %182 = math.exp %181 : vector<2x32x32xf32>
    %cst_72 = arith.constant dense<0.000000e+00> : vector<2x32xf32>
    %183 = vector.multi_reduction <add>, %182, %cst_72 [2] : vector<2x32x32xf32> to vector<2x32xf32>
    %184 = vector.shape_cast %183 : vector<2x32xf32> to vector<2x32x1xf32>
    %185 = tpu.reciprocal %184 {approx = true} : vector<2x32x1xf32> -> vector<2x32x1xf32>
    %186 = vector.broadcast %185 : vector<2x32x1xf32> to vector<2x32x32xf32>
    %187 = arith.mulf %182, %186 : vector<2x32x32xf32>
    %188 = arith.truncf %187 : vector<2x32x32xf32> to vector<2x32x32xbf16>
    "tpu.trace_start"() <{level = 10 : i32, message = "bnm,bmd->bnd"}> : () -> ()
    %cst_73 = arith.constant dense<0.000000e+00> : vector<2x32x16xf32>
    %189 = tpu.matmul %188, %171, %cst_73 {dimension_numbers = #tpu.dot_dimension_numbers<[2], [1], [1], [2], [0, 0, 0, 1, 1, 2], [0], [0]>} : vector<2x32x32xbf16>, vector<2x32x16xbf16>, vector<2x32x16xf32> -> vector<2x32x16xf32>
    "tpu.trace_stop"() : () -> ()
    %190 = vector.extract_strided_slice %189 {offsets = [0, 0, 0], sizes = [2, 8, 16], strides = [1, 1, 1]} : vector<2x32x16xf32> to vector<2x8x16xf32>
    %191 = vector.extract_strided_slice %189 {offsets = [0, 8, 0], sizes = [2, 8, 16], strides = [1, 1, 1]} : vector<2x32x16xf32> to vector<2x8x16xf32>
    %192 = vector.extract_strided_slice %189 {offsets = [0, 16, 0], sizes = [2, 8, 16], strides = [1, 1, 1]} : vector<2x32x16xf32> to vector<2x8x16xf32>
    %193 = vector.extract_strided_slice %189 {offsets = [0, 24, 0], sizes = [2, 8, 16], strides = [1, 1, 1]} : vector<2x32x16xf32> to vector<2x8x16xf32>
    %194 = tpu.concatenate %190, %191, %192, %193 in 2 : vector<2x8x16xf32>, vector<2x8x16xf32>, vector<2x8x16xf32>, vector<2x8x16xf32> -> vector<2x8x64xf32>
    %195 = vector.shape_cast %194 : vector<2x8x64xf32> to vector<16x64xf32>
    %196 = arith.truncf %195 : vector<16x64xf32> to vector<16x64xbf16>
    %c1_74 = arith.constant 1 : index
    %c0_75 = arith.constant 0 : index
    %c0_76 = arith.constant 0 : index
    %197 = vector.load %arg6[%c1_74, %c0_75, %c0_76] : memref<2x64x64xbf16, #tpu.memory_space<vmem>>, vector<1x64x64xbf16>
    %198 = vector.shape_cast %197 : vector<1x64x64xbf16> to vector<64x64xbf16>
    %cst_77 = arith.constant dense<0.000000e+00> : vector<16x64xf32>
    %199 = tpu.matmul %196, %198, %cst_77 {dimension_numbers = #tpu.dot_dimension_numbers<[1], [0], [0], [1], [0, 0, 1, 1], [], []>} : vector<16x64xbf16>, vector<64x64xbf16>, vector<16x64xf32> -> vector<16x64xf32>
    %c1_78 = arith.constant 1 : index
    %c0_79 = arith.constant 0 : index
    %c0_80 = arith.constant 0 : index
    %200 = vector.load %arg7[%c1_78, %c0_79, %c0_80] : memref<2x1x64xf32, #tpu.memory_space<vmem>>, vector<1x1x64xf32>
    %201 = vector.shape_cast %200 : vector<1x1x64xf32> to vector<1x64xf32>
    %202 = vector.broadcast %201 : vector<1x64xf32> to vector<16x64xf32>
    %203 = arith.addf %199, %202 : vector<16x64xf32>
    %204 = arith.addf %124, %203 : vector<16x64xf32>
    %c1_81 = arith.constant 1 : index
    %c0_82 = arith.constant 0 : index
    %c0_83 = arith.constant 0 : index
    %205 = vector.load %arg8[%c1_81, %c0_82, %c0_83] : memref<2x1x64xf32, #tpu.memory_space<vmem>>, vector<1x1x64xf32>
    %206 = vector.shape_cast %205 : vector<1x1x64xf32> to vector<1x64xf32>
    %c1_84 = arith.constant 1 : index
    %c0_85 = arith.constant 0 : index
    %c0_86 = arith.constant 0 : index
    %207 = vector.load %arg9[%c1_84, %c0_85, %c0_86] : memref<2x1x64xf32, #tpu.memory_space<vmem>>, vector<1x1x64xf32>
    %208 = vector.shape_cast %207 : vector<1x1x64xf32> to vector<1x64xf32>
    %cst_87 = arith.constant dense<0.000000e+00> : vector<16xf32>
    %209 = vector.multi_reduction <add>, %204, %cst_87 [1] : vector<16x64xf32> to vector<16xf32>
    %210 = vector.shape_cast %209 : vector<16xf32> to vector<16x1xf32>
    %cst_88 = arith.constant 6.400000e+01 : f32
    %211 = vector.broadcast %cst_88 : f32 to vector<16x1xf32>
    %212 = arith.divf %210, %211 : vector<16x1xf32>
    %213 = vector.broadcast %212 : vector<16x1xf32> to vector<16x64xf32>
    %214 = arith.subf %204, %213 : vector<16x64xf32>
    %215 = arith.mulf %214, %214 : vector<16x64xf32>
    %cst_89 = arith.constant dense<0.000000e+00> : vector<16xf32>
    %216 = vector.multi_reduction <add>, %215, %cst_89 [1] : vector<16x64xf32> to vector<16xf32>
    %217 = vector.shape_cast %216 : vector<16xf32> to vector<16x1xf32>
    %cst_90 = arith.constant 6.400000e+01 : f32
    %218 = vector.broadcast %cst_90 : f32 to vector<16x1xf32>
    %219 = arith.divf %217, %218 : vector<16x1xf32>
    %cst_91 = arith.constant 9.99999974E-6 : f32
    %220 = vector.broadcast %cst_91 : f32 to vector<16x1xf32>
    %221 = arith.addf %219, %220 : vector<16x1xf32>
    %222 = math.rsqrt %221 : vector<16x1xf32>
    %223 = vector.broadcast %222 : vector<16x1xf32> to vector<16x64xf32>
    %224 = arith.mulf %214, %223 : vector<16x64xf32>
    %225 = vector.broadcast %206 : vector<1x64xf32> to vector<16x64xf32>
    %226 = arith.mulf %224, %225 : vector<16x64xf32>
    %227 = vector.broadcast %208 : vector<1x64xf32> to vector<16x64xf32>
    %228 = arith.addf %226, %227 : vector<16x64xf32>
    %229 = arith.truncf %228 : vector<16x64xf32> to vector<16x64xbf16>
    %c1_92 = arith.constant 1 : index
    %c0_93 = arith.constant 0 : index
    %c0_94 = arith.constant 0 : index
    %230 = vector.load %arg10[%c1_92, %c0_93, %c0_94] : memref<2x64x256xbf16, #tpu.memory_space<vmem>>, vector<1x64x256xbf16>
    %231 = vector.shape_cast %230 : vector<1x64x256xbf16> to vector<64x256xbf16>
    %cst_95 = arith.constant dense<0.000000e+00> : vector<16x256xf32>
    %232 = tpu.matmul %229, %231, %cst_95 {dimension_numbers = #tpu.dot_dimension_numbers<[1], [0], [0], [1], [0, 0, 1, 1], [], []>} : vector<16x64xbf16>, vector<64x256xbf16>, vector<16x256xf32> -> vector<16x256xf32>
    %c1_96 = arith.constant 1 : index
    %c0_97 = arith.constant 0 : index
    %c0_98 = arith.constant 0 : index
    %233 = vector.load %arg11[%c1_96, %c0_97, %c0_98] : memref<2x1x256xf32, #tpu.memory_space<vmem>>, vector<1x1x256xf32>
    %234 = vector.shape_cast %233 : vector<1x1x256xf32> to vector<1x256xf32>
    %235 = vector.broadcast %234 : vector<1x256xf32> to vector<16x256xf32>
    %236 = arith.addf %232, %235 : vector<16x256xf32>
    %cst_99 = arith.constant 0.000000e+00 : f32
    %237 = vector.broadcast %cst_99 : f32 to vector<16x256xf32>
    %238 = arith.maximumf %236, %237 : vector<16x256xf32>
    %239 = arith.truncf %238 : vector<16x256xf32> to vector<16x256xbf16>
    %c1_100 = arith.constant 1 : index
    %c0_101 = arith.constant 0 : index
    %c0_102 = arith.constant 0 : index
    %240 = vector.load %arg12[%c1_100, %c0_101, %c0_102] : memref<2x256x64xbf16, #tpu.memory_space<vmem>>, vector<1x256x64xbf16>
    %241 = vector.shape_cast %240 : vector<1x256x64xbf16> to vector<256x64xbf16>
    %cst_103 = arith.constant dense<0.000000e+00> : vector<16x64xf32>
    %242 = tpu.matmul %239, %241, %cst_103 {dimension_numbers = #tpu.dot_dimension_numbers<[1], [0], [0], [1], [0, 0, 1, 1], [], []>} : vector<16x256xbf16>, vector<256x64xbf16>, vector<16x64xf32> -> vector<16x64xf32>
    %c1_104 = arith.constant 1 : index
    %c0_105 = arith.constant 0 : index
    %c0_106 = arith.constant 0 : index
    %243 = vector.load %arg13[%c1_104, %c0_105, %c0_106] : memref<2x1x64xf32, #tpu.memory_space<vmem>>, vector<1x1x64xf32>
    %244 = vector.shape_cast %243 : vector<1x1x64xf32> to vector<1x64xf32>
    %245 = vector.broadcast %244 : vector<1x64xf32> to vector<16x64xf32>
    %246 = arith.addf %242, %245 : vector<16x64xf32>
    %247 = arith.addf %204, %246 : vector<16x64xf32>
    %c0_107 = arith.constant 0 : index
    %c0_108 = arith.constant 0 : index
    %248 = vector.load %arg14[%c0_107, %c0_108] : memref<1x64xf32, #tpu.memory_space<vmem>>, vector<1x64xf32>
    %c0_109 = arith.constant 0 : index
    %c0_110 = arith.constant 0 : index
    %249 = vector.load %arg15[%c0_109, %c0_110] : memref<1x64xf32, #tpu.memory_space<vmem>>, vector<1x64xf32>
    %cst_111 = arith.constant dense<0.000000e+00> : vector<16xf32>
    %250 = vector.multi_reduction <add>, %247, %cst_111 [1] : vector<16x64xf32> to vector<16xf32>
    %251 = vector.shape_cast %250 : vector<16xf32> to vector<16x1xf32>
    %cst_112 = arith.constant 6.400000e+01 : f32
    %252 = vector.broadcast %cst_112 : f32 to vector<16x1xf32>
    %253 = arith.divf %251, %252 : vector<16x1xf32>
    %254 = vector.broadcast %253 : vector<16x1xf32> to vector<16x64xf32>
    %255 = arith.subf %247, %254 : vector<16x64xf32>
    %256 = arith.mulf %255, %255 : vector<16x64xf32>
    %cst_113 = arith.constant dense<0.000000e+00> : vector<16xf32>
    %257 = vector.multi_reduction <add>, %256, %cst_113 [1] : vector<16x64xf32> to vector<16xf32>
    %258 = vector.shape_cast %257 : vector<16xf32> to vector<16x1xf32>
    %cst_114 = arith.constant 6.400000e+01 : f32
    %259 = vector.broadcast %cst_114 : f32 to vector<16x1xf32>
    %260 = arith.divf %258, %259 : vector<16x1xf32>
    %cst_115 = arith.constant 9.99999974E-6 : f32
    %261 = vector.broadcast %cst_115 : f32 to vector<16x1xf32>
    %262 = arith.addf %260, %261 : vector<16x1xf32>
    %263 = math.rsqrt %262 : vector<16x1xf32>
    %264 = vector.broadcast %263 : vector<16x1xf32> to vector<16x64xf32>
    %265 = arith.mulf %255, %264 : vector<16x64xf32>
    %266 = vector.broadcast %248 : vector<1x64xf32> to vector<16x64xf32>
    %267 = arith.mulf %265, %266 : vector<16x64xf32>
    %268 = vector.broadcast %249 : vector<1x64xf32> to vector<16x64xf32>
    %269 = arith.addf %267, %268 : vector<16x64xf32>
    %270 = arith.truncf %269 : vector<16x64xf32> to vector<16x64xbf16>
    %c0_116 = arith.constant 0 : index
    %c0_117 = arith.constant 0 : index
    %271 = vector.load %arg16[%c0_116, %c0_117] : memref<64x128xbf16, #tpu.memory_space<vmem>>, vector<64x128xbf16>
    %cst_118 = arith.constant dense<0.000000e+00> : vector<16x128xf32>
    %272 = tpu.matmul %270, %271, %cst_118 {dimension_numbers = #tpu.dot_dimension_numbers<[1], [0], [0], [1], [0, 0, 1, 1], [], []>} : vector<16x64xbf16>, vector<64x128xbf16>, vector<16x128xf32> -> vector<16x128xf32>
    %c0_119 = arith.constant 0 : index
    %c0_120 = arith.constant 0 : index
    %273 = vector.load %arg17[%c0_119, %c0_120] : memref<1x128xf32, #tpu.memory_space<vmem>>, vector<1x128xf32>
    %274 = vector.broadcast %273 : vector<1x128xf32> to vector<16x128xf32>
    %275 = arith.addf %272, %274 : vector<16x128xf32>
    %c0_121 = arith.constant 0 : index
    %c0_122 = arith.constant 0 : index
    %276 = vector.load %arg18[%c0_121, %c0_122] : memref<16x128xf32, #tpu.memory_space<vmem>>, vector<16x128xf32>
    tpu.vector_store %arg18[%c0_121, %c0_122], %275 {strides = array<i32>} : memref<16x128xf32, #tpu.memory_space<vmem>>, vector<16x128xf32>,
    return
  }
  func.func @transform_0(%arg0: i32) -> (i32, i32) {
    %c0_i32 = arith.constant 0 : i32
    %c0_i32_0 = arith.constant 0 : i32
    %c0_i32_1 = arith.constant 0 : i32
    return %c0_i32, %c0_i32_0 : i32, i32
  }
  func.func @transform_1(%arg0: i32) -> (i32, i32) {
    %c0_i32 = arith.constant 0 : i32
    %c0_i32_0 = arith.constant 0 : i32
    %c0_i32_1 = arith.constant 0 : i32
    return %c0_i32, %c0_i32_0 : i32, i32
  }
  func.func @transform_2(%arg0: i32) -> (i32, i32, i32) {
    %c0_i32 = arith.constant 0 : i32
    %c0_i32_0 = arith.constant 0 : i32
    %c0_i32_1 = arith.constant 0 : i32
    %c0_i32_2 = arith.constant 0 : i32
    return %c0_i32, %c0_i32_0, %c0_i32_1 : i32, i32, i32
  }
  func.func @transform_3(%arg0: i32) -> (i32, i32, i32) {
    %c0_i32 = arith.constant 0 : i32
    %c0_i32_0 = arith.constant 0 : i32
    %c0_i32_1 = arith.constant 0 : i32
    %c0_i32_2 = arith.constant 0 : i32
    return %c0_i32, %c0_i32_0, %c0_i32_1 : i32, i32, i32
  }
  func.func @transform_4(%arg0: i32) -> (i32, i32, i32) {
    %c0_i32 = arith.constant 0 : i32
    %c0_i32_0 = arith.constant 0 : i32
    %c0_i32_1 = arith.constant 0 : i32
    %c0_i32_2 = arith.constant 0 : i32
    return %c0_i32, %c0_i32_0, %c0_i32_1 : i32, i32, i32
  }
  func.func @transform_5(%arg0: i32) -> (i32, i32, i32) {
    %c0_i32 = arith.constant 0 : i32
    %c0_i32_0 = arith.constant 0 : i32
    %c0_i32_1 = arith.constant 0 : i32
    %c0_i32_2 = arith.constant 0 : i32
    return %c0_i32, %c0_i32_0, %c0_i32_1 : i32, i32, i32
  }
  func.func @transform_6(%arg0: i32) -> (i32, i32, i32) {
    %c0_i32 = arith.constant 0 : i32
    %c0_i32_0 = arith.constant 0 : i32
    %c0_i32_1 = arith.constant 0 : i32
    %c0_i32_2 = arith.constant 0 : i32
    return %c0_i32, %c0_i32_0, %c0_i32_1 : i32, i32, i32
  }
  func.func @transform_7(%arg0: i32) -> (i32, i32, i32) {
    %c0_i32 = arith.constant 0 : i32
    %c0_i32_0 = arith.constant 0 : i32
    %c0_i32_1 = arith.constant 0 : i32
    %c0_i32_2 = arith.constant 0 : i32
    return %c0_i32, %c0_i32_0, %c0_i32_1 : i32, i32, i32
  }
  func.func @transform_8(%arg0: i32) -> (i32, i32, i32) {
    %c0_i32 = arith.constant 0 : i32
    %c0_i32_0 = arith.constant 0 : i32
    %c0_i32_1 = arith.constant 0 : i32
    %c0_i32_2 = arith.constant 0 : i32
    return %c0_i32, %c0_i32_0, %c0_i32_1 : i32, i32, i32
  }
  func.func @transform_9(%arg0: i32) -> (i32, i32, i32) {
    %c0_i32 = arith.constant 0 : i32
    %c0_i32_0 = arith.constant 0 : i32
    %c0_i32_1 = arith.constant 0 : i32
    %c0_i32_2 = arith.constant 0 : i32
    return %c0_i32, %c0_i32_0, %c0_i32_1 : i32, i32, i32
  }
  func.func @transform_10(%arg0: i32) -> (i32, i32, i32) {
    %c0_i32 = arith.constant 0 : i32
    %c0_i32_0 = arith.constant 0 : i32
    %c0_i32_1 = arith.constant 0 : i32
    %c0_i32_2 = arith.constant 0 : i32
    return %c0_i32, %c0_i32_0, %c0_i32_1 : i32, i32, i32
  }
  func.func @transform_11(%arg0: i32) -> (i32, i32, i32) {
    %c0_i32 = arith.constant 0 : i32
    %c0_i32_0 = arith.constant 0 : i32
    %c0_i32_1 = arith.constant 0 : i32
    %c0_i32_2 = arith.constant 0 : i32
    return %c0_i32, %c0_i32_0, %c0_i32_1 : i32, i32, i32
  }
  func.func @transform_12(%arg0: i32) -> (i32, i32, i32) {
    %c0_i32 = arith.constant 0 : i32
    %c0_i32_0 = arith.constant 0 : i32
    %c0_i32_1 = arith.constant 0 : i32
    %c0_i32_2 = arith.constant 0 : i32
    return %c0_i32, %c0_i32_0, %c0_i32_1 : i32, i32, i32
  }
  func.func @transform_13(%arg0: i32) -> (i32, i32) {
    %c0_i32 = arith.constant 0 : i32
    %c0_i32_0 = arith.constant 0 : i32
    %c0_i32_1 = arith.constant 0 : i32
    return %c0_i32, %c0_i32_0 : i32, i32
  }
  func.func @transform_14(%arg0: i32) -> (i32, i32) {
    %c0_i32 = arith.constant 0 : i32
    %c0_i32_0 = arith.constant 0 : i32
    %c0_i32_1 = arith.constant 0 : i32
    return %c0_i32, %c0_i32_0 : i32, i32
  }
  func.func @transform_15(%arg0: i32) -> (i32, i32) {
    %c0_i32 = arith.constant 0 : i32
    %c0_i32_0 = arith.constant 0 : i32
    %c0_i32_1 = arith.constant 0 : i32
    return %c0_i32, %c0_i32_0 : i32, i32
  }
  func.func @transform_16(%arg0: i32) -> (i32, i32) {
    %c0_i32 = arith.constant 0 : i32
    %c0_i32_0 = arith.constant 0 : i32
    %c0_i32_1 = arith.constant 0 : i32
    return %c0_i32, %c0_i32_0 : i32, i32
  }
  func.func @transform_17(%arg0: i32) -> (i32, i32) {
    %c0_i32 = arith.constant 0 : i32
    %c0_i32_0 = arith.constant 0 : i32
    %c0_i32_1 = arith.constant 0 : i32
    return %c0_i32, %c0_i32_0 : i32, i32
  }
}

</mosaic_0001>

<llo_original>
// kernel: gpt2_forward.1
$region0: #{gpt2_forward.1}
  #allocation0 [shape = 'u32[]', space=smem, size = 0x4, offset = 0x4, fixed_abs, tag = 'smem constant byte address 0x4 - core index']
  #allocation1 [shape = 'u32[144,128]{1,0:T(1,128)}', space=vmem, size = 0x12000, scoped, tag = 'internal scratch']
  %s0 = inlined_call_operand.vmem [shape: f32[16,64], index: 0, kind: input, shape index: {}]
  %s1 = inlined_call_operand.vmem [shape: f32[32,32], index: 1, kind: input, shape index: {}]
  %s2 = inlined_call_operand.vmem [shape: f32[2,1,64], index: 2, kind: input, shape index: {}]
  %s3 = inlined_call_operand.vmem [shape: f32[2,1,64], index: 3, kind: input, shape index: {}]
  %s4 = inlined_call_operand.vmem [shape: bf16[2,64,192], index: 4, kind: input, shape index: {}]
  %s5 = inlined_call_operand.vmem [shape: bf16[2,64,64], index: 5, kind: input, shape index: {}]
  %s6 = inlined_call_operand.vmem [shape: f32[2,1,64], index: 6, kind: input, shape index: {}]
  %s7 = inlined_call_operand.vmem [shape: f32[2,1,64], index: 7, kind: input, shape index: {}]
  %s8 = inlined_call_operand.vmem [shape: f32[2,1,64], index: 8, kind: input, shape index: {}]
  %s9 = inlined_call_operand.vmem [shape: bf16[2,64,256], index: 9, kind: input, shape index: {}]
  %s10 = inlined_call_operand.vmem [shape: f32[2,1,256], index: 10, kind: input, shape index: {}]
  %s11 = inlined_call_operand.vmem [shape: bf16[2,256,64], index: 11, kind: input, shape index: {}]
  %s12 = inlined_call_operand.vmem [shape: f32[2,1,64], index: 12, kind: input, shape index: {}]
  %s13 = inlined_call_operand.vmem [shape: f32[1,64], index: 13, kind: input, shape index: {}]
  %s14 = inlined_call_operand.vmem [shape: f32[1,64], index: 14, kind: input, shape index: {}]
  %s15 = inlined_call_operand.vmem [shape: bf16[64,128], index: 15, kind: input, shape index: {}]
  %s16 = inlined_call_operand.vmem [shape: f32[1,128], index: 16, kind: input, shape index: {}]
  %s17 = inlined_call_operand.hbm [shape: f32[16,128], index: 17, kind: output, shape index: {}]
  %s18 = sld [smem:[#allocation0]]
  $region78: #{gpt2_forward.1} parent=0
    _
  %s20 = ssub.s32 1, %s18
  %s21 = scalar_select 0, %s20, %s18
  $region1: #{gpt2_forward.1} parent=0
    #allocation2 [shape = 'u8[8192]{0}', space=vmem, size = 0x2000, scoped, tag = 'output window, operand 0, single buffered']
    #allocation3 [shape = 's32[1]{0}', space=sflag, size = 0x4, scoped, tag = 'scoped memory for gpt2_forward.1']
    %22 = vsyncpa [#allocation3], 0
    // Predicated region
    $region2: #{gpt2_forward.1} parent=1 // pred_check
      _
    $region3: #{gpt2_forward.1} parent=1 // pred_check_branch
      %24 = sbr.rel (0) target = $region5
    $region4: #{gpt2_forward.1} parent=1 // pred_region
      _
    $region5: #{gpt2_forward.1} parent=1 // pred_fallthru
      _
    // Predicated region
    $region6: #{gpt2_forward.1} parent=1 // pred_check
      _
    $region7: #{gpt2_forward.1} parent=1 // pred_check_branch
      %26 = sbr.rel (0) target = $region9
    $region8: #{gpt2_forward.1} parent=1 // pred_region
      _
    $region9: #{gpt2_forward.1} parent=1 // pred_fallthru
      _
    // Predicated region
    $region10: #{gpt2_forward.1} parent=1 // pred_check
      _
    $region11: #{gpt2_forward.1} parent=1 // pred_check_branch
      %28 = sbr.rel (0) target = $region13
    $region12: #{gpt2_forward.1} parent=1 // pred_region
      _
    $region13: #{gpt2_forward.1} parent=1 // pred_fallthru
      _
    // Predicated region
    $region14: #{gpt2_forward.1} parent=1 // pred_check
      _
    $region15: #{gpt2_forward.1} parent=1 // pred_check_branch
      %30 = sbr.rel (0) target = $region17
    $region16: #{gpt2_forward.1} parent=1 // pred_region
      _
    $region17: #{gpt2_forward.1} parent=1 // pred_fallthru
      _
    // Predicated region
    $region18: #{gpt2_forward.1} parent=1 // pred_check
      _
    $region19: #{gpt2_forward.1} parent=1 // pred_check_branch
      %32 = sbr.rel (0) target = $region21
    $region20: #{gpt2_forward.1} parent=1 // pred_region
      _
    $region21: #{gpt2_forward.1} parent=1 // pred_fallthru
      _
    // Predicated region
    $region22: #{gpt2_forward.1} parent=1 // pred_check
      _
    $region23: #{gpt2_forward.1} parent=1 // pred_check_branch
      %34 = sbr.rel (0) target = $region25
    $region24: #{gpt2_forward.1} parent=1 // pred_region
      _
    $region25: #{gpt2_forward.1} parent=1 // pred_fallthru
      _
    // Predicated region
    $region26: #{gpt2_forward.1} parent=1 // pred_check
      _
    $region27: #{gpt2_forward.1} parent=1 // pred_check_branch
      %36 = sbr.rel (0) target = $region29
    $region28: #{gpt2_forward.1} parent=1 // pred_region
      _
    $region29: #{gpt2_forward.1} parent=1 // pred_fallthru
      _
    // Predicated region
    $region30: #{gpt2_forward.1} parent=1 // pred_check
      _
    $region31: #{gpt2_forward.1} parent=1 // pred_check_branch
      %38 = sbr.rel (0) target = $region33
    $region32: #{gpt2_forward.1} parent=1 // pred_region
      _
    $region33: #{gpt2_forward.1} parent=1 // pred_fallthru
      _
    // Predicated region
    $region34: #{gpt2_forward.1} parent=1 // pred_check
      _
    $region35: #{gpt2_forward.1} parent=1 // pred_check_branch
      %40 = sbr.rel (0) target = $region37
    $region36: #{gpt2_forward.1} parent=1 // pred_region
      _
    $region37: #{gpt2_forward.1} parent=1 // pred_fallthru
      _
    // Predicated region
    $region38: #{gpt2_forward.1} parent=1 // pred_check
      _
    $region39: #{gpt2_forward.1} parent=1 // pred_check_branch
      %42 = sbr.rel (0) target = $region41
    $region40: #{gpt2_forward.1} parent=1 // pred_region
      _
    $region41: #{gpt2_forward.1} parent=1 // pred_fallthru
      _
    // Predicated region
    $region42: #{gpt2_forward.1} parent=1 // pred_check
      _
    $region43: #{gpt2_forward.1} parent=1 // pred_check_branch
      %44 = sbr.rel (0) target = $region45
    $region44: #{gpt2_forward.1} parent=1 // pred_region
      _
    $region45: #{gpt2_forward.1} parent=1 // pred_fallthru
      _
    // Predicated region
    $region46: #{gpt2_forward.1} parent=1 // pred_check
      _
    $region47: #{gpt2_forward.1} parent=1 // pred_check_branch
      %46 = sbr.rel (0) target = $region49
    $region48: #{gpt2_forward.1} parent=1 // pred_region
      _
    $region49: #{gpt2_forward.1} parent=1 // pred_fallthru
      _
    // Predicated region
    $region50: #{gpt2_forward.1} parent=1 // pred_check
      _
    $region51: #{gpt2_forward.1} parent=1 // pred_check_branch
      %48 = sbr.rel (0) target = $region53
    $region52: #{gpt2_forward.1} parent=1 // pred_region
      _
    $region53: #{gpt2_forward.1} parent=1 // pred_fallthru
      _
    // Predicated region
    $region54: #{gpt2_forward.1} parent=1 // pred_check
      _
    $region55: #{gpt2_forward.1} parent=1 // pred_check_branch
      %50 = sbr.rel (0) target = $region57
    $region56: #{gpt2_forward.1} parent=1 // pred_region
      _
    $region57: #{gpt2_forward.1} parent=1 // pred_fallthru
      _
    // Predicated region
    $region58: #{gpt2_forward.1} parent=1 // pred_check
      _
    $region59: #{gpt2_forward.1} parent=1 // pred_check_branch
      %52 = sbr.rel (0) target = $region61
    $region60: #{gpt2_forward.1} parent=1 // pred_region
      _
    $region61: #{gpt2_forward.1} parent=1 // pred_fallthru
      _
    // Predicated region
    $region62: #{gpt2_forward.1} parent=1 // pred_check
      _
    $region63: #{gpt2_forward.1} parent=1 // pred_check_branch
      %54 = sbr.rel (0) target = $region65
    $region64: #{gpt2_forward.1} parent=1 // pred_region
      _
    $region65: #{gpt2_forward.1} parent=1 // pred_fallthru
      _
    // Predicated region
    $region66: #{gpt2_forward.1} parent=1 // pred_check
      _
    $region67: #{gpt2_forward.1} parent=1 // pred_check_branch
      %56 = sbr.rel (0) target = $region69
    $region68: #{gpt2_forward.1} parent=1 // pred_region
      _
    $region69: #{gpt2_forward.1} parent=1 // pred_fallthru
      _
    %v58 = vld [vmem:[%s0] sm:$0xff]
    %v59 = vld [vmem:[%s0 + $0x8] sm:$0xff]
    %v60 = vld [vmem:[%s1] sm:$0xff]
    %v61 = vld [vmem:[%s1 + $0x8] sm:$0xff]
    %v62 = vld [vmem:[%s1 + $0x10] sm:$0xff]
    %v63 = vld [vmem:[%s1 + $0x18] sm:$0xff]
    %v64 = vld [vmem:[%s2] sm:$0x1]
    %v65 = vld [vmem:[%s3] sm:$0x1]
    %vm66 = vcmask 523264
    %v67 = vsel %vm66, %v58, 0.0
    %68 = vadd.xlane.f32.xlu0 %v67
    %v69 = vpop.xlane.xlu0 %68
    %v70 = vsel %vm66, %v59, 0.0
    %71 = vadd.xlane.f32.xlu0 %v70
    %v72 = vpop.xlane.xlu0 %71
    %v73 = vrcp.pop 64.0
    %v74 = vmul.f32 %v69, %v73
    %v75 = vmul.f32 %v72, %v73
    %v76 = vsub.f32 %v58, %v74
    %v77 = vsub.f32 %v59, %v75
    %v78 = vmul.f32 %v76, %v76
    %v79 = vmul.f32 %v77, %v77
    %v80 = vsel %vm66, %v78, 0.0
    %81 = vadd.xlane.f32.xlu0 %v80
    %v82 = vpop.xlane.xlu0 %81
    %v83 = vsel %vm66, %v79, 0.0
    %84 = vadd.xlane.f32.xlu0 %v83
    %v85 = vpop.xlane.xlu0 %84
    %v86 = vmul.f32 %v82, %v73
    %v87 = vmul.f32 %v85, %v73
    %v88 = vadd.f32 %v86, 1e-05
    %v89 = vadd.f32 %v87, 1e-05
    %v90 = vrsqrt.pop %v88
    %v91 = vrsqrt.pop %v89
    %v92 = vmul.f32 %v76, %v90
    %v93 = vmul.f32 %v77, %v91
    %v95 = vlaneseq
    %v96 = vshrl.u32 %v95, 7
    %v97 = vsub.s32 0, %v96
    %v98 = vrot.slane %v64, %v97
    %v100 = vmul.f32 %v92, %v98
    %v101 = vmul.f32 %v93, %v98
    %v103 = vlaneseq
    %v104 = vshrl.u32 %v103, 7
    %v105 = vsub.s32 0, %v104
    %v106 = vrot.slane %v65, %v105
    %v108 = vadd.f32 %v100, %v106
    %v109 = vadd.f32 %v101, %v106
    %v110 = vpack.c.bf16 %v109, %v108
    %v111 = vld [vmem:[%s4] sm:$0xff]
    %v112 = vld [vmem:[%s4 + $0x8] sm:$0xff]
    %v113 = vld [vmem:[%s4 + $0x10] sm:$0xff]
    %v114 = vld [vmem:[%s4 + $0x18] sm:$0xff]
    %v115 = vld [vmem:[%s4 + $0x20] sm:$0xff]
    %v116 = vld [vmem:[%s4 + $0x28] sm:$0xff]
    %v117 = vld [vmem:[%s4 + $0x30] sm:$0xff]
    %v118 = vld [vmem:[%s4 + $0x38] sm:$0xff]
    %v127 = vunpack.c.l.b16 %v111
    %v128 = vunpack.c.h.b16 %v111
    %v129 = vunpack.c.l.b16 %v112
    %v130 = vunpack.c.h.b16 %v112
    %v131 = vunpack.c.l.b16 %v113
    %v132 = vunpack.c.h.b16 %v113
    %v133 = vunpack.c.l.b16 %v114
    %v134 = vunpack.c.h.b16 %v114
    %v135 = vunpack.c.l.b16 %v115
    %v136 = vunpack.c.h.b16 %v115
    %v137 = vunpack.c.l.b16 %v116
    %v138 = vunpack.c.h.b16 %v116
    %v139 = vunpack.c.l.b16 %v117
    %v140 = vunpack.c.h.b16 %v117
    %v141 = vunpack.c.l.b16 %v118
    %v142 = vunpack.c.h.b16 %v118
    %v143 = vpack.c.b16 %v129, %v127
    %v144 = vpack.c.b16 %v130, %v128
    %v145 = vpack.c.b16 %v133, %v131
    %v146 = vpack.c.b16 %v134, %v132
    %v147 = vpack.c.b16 %v137, %v135
    %v148 = vpack.c.b16 %v138, %v136
    %v149 = vpack.c.b16 %v141, %v139
    %v150 = vpack.c.b16 %v142, %v140
    %v160 = vsel %vm66, %v110, 0
    %162 = vmatprep.subr.bf16.mxu0 %v144
    %163 = vmatpush1.bf16.msra.mxu0 %v143
    %164 = vmatprep.subr.bf16.mxu0 %v146
    %165 = vmatpush1.bf16.msra.mxu0 %v145
    %166 = vmatprep.subr.bf16.mxu0 %v148
    %167 = vmatpush1.bf16.msra.mxu0 %v147
    %168 = vmatprep.subr.bf16.mxu0 %v150
    %169 = vmatpush1.bf16.msra.mxu0 %v149
    %170 = vmatprep.subr.bf16.mxu0 0
    %171 = vmatpush1.bf16.msra.mxu0 0
    %172 = vmatprep.subr.bf16.mxu0 0
    %173 = vmatpush1.bf16.msra.mxu0 0
    %174 = vmatprep.subr.bf16.mxu0 0
    %175 = vmatpush1.bf16.msra.mxu0 0
    %176 = vmatprep.subr.bf16.mxu0 0
    %177 = vmatpush1.bf16.msra.mxu0 0
    %178 = vmatprep.subr.bf16.mxu0 0
    %179 = vmatpush1.bf16.msra.mxu0 0
    %180 = vmatprep.subr.bf16.mxu0 0
    %181 = vmatpush1.bf16.msra.mxu0 0
    %182 = vmatprep.subr.bf16.mxu0 0
    %183 = vmatpush1.bf16.msra.mxu0 0
    %184 = vmatprep.subr.bf16.mxu0 0
    %185 = vmatpush1.bf16.msra.mxu0 0
    %186 = vmatprep.subr.bf16.mxu0 0
    %187 = vmatpush1.bf16.msra.mxu0 0
    %188 = vmatprep.subr.bf16.mxu0 0
    %189 = vmatpush1.bf16.msra.mxu0 0
    %190 = vmatprep.subr.bf16.mxu0 0
    %191 = vmatpush1.bf16.msra.mxu0 0
    %192 = vmatprep.subr.bf16.mxu0 0
    %193 = vmatpush1.bf16.msra.mxu0 0
    %194 = vmatprep.mubr.bf16.mxu0 0
    %195 = vmatmul.mubr.bf16.gmra.mrb[0].mxu0 %v160
    %v196 = vpop.f32.mrb[0].mxu0
    %v197 = vadd.f32 0.0, %v196
    %v198 = vpop.f32.mrb[0].mxu0
    %v199 = vadd.f32 0.0, %v198
    %v200 = vpop.f32.mrb[0].mxu0
    %v201 = vadd.f32 0.0, %v200
    %v202 = vpop.f32.mrb[0].mxu0
    %v203 = vadd.f32 0.0, %v202
    %204 = vdwg.mxu0
    %207 = vrot.lane.b32.xlu0 %v197, 112
    %v208 = vpop.permute.xlu0 %207
    %209 = vrot.lane.b32.xlu0 %v201, 112
    %v210 = vpop.permute.xlu0 %209
    %213 = vrot.lane.b32.xlu0 %v197, 96
    %v214 = vpop.permute.xlu0 %213
    %215 = vrot.lane.b32.xlu0 %v201, 96
    %v216 = vpop.permute.xlu0 %215
    %219 = vrot.lane.b32.xlu0 %v197, 80
    %v220 = vpop.permute.xlu0 %219
    %221 = vrot.lane.b32.xlu0 %v201, 80
    %v222 = vpop.permute.xlu0 %221
    %v225 = vpack.c.bf16 %v208, %v197
    %v226 = vpack.c.bf16 %v220, %v214
    %v227 = vpack.c.bf16 %v210, %v201
    %v228 = vpack.c.bf16 %v222, %v216
    %231 = vrot.lane.b32.xlu0 %v199, 112
    %v232 = vpop.permute.xlu0 %231
    %233 = vrot.lane.b32.xlu0 %v203, 112
    %v234 = vpop.permute.xlu0 %233
    %237 = vrot.lane.b32.xlu0 %v199, 96
    %v238 = vpop.permute.xlu0 %237
    %239 = vrot.lane.b32.xlu0 %v203, 96
    %v240 = vpop.permute.xlu0 %239
    %243 = vrot.lane.b32.xlu0 %v199, 80
    %v244 = vpop.permute.xlu0 %243
    %245 = vrot.lane.b32.xlu0 %v203, 80
    %v246 = vpop.permute.xlu0 %245
    %v249 = vpack.c.bf16 %v232, %v199
    %v250 = vpack.c.bf16 %v244, %v238
    %v251 = vpack.c.bf16 %v234, %v203
    %v252 = vpack.c.bf16 %v246, %v240
    %255 = vrot.lane.b32.xlu0 %v225, 64
    %v256 = vpop.permute.xlu0 %255
    %257 = vrot.lane.b32.xlu0 %v226, 64
    %v258 = vpop.permute.xlu0 %257
    %vm259 = vcmask 130048
    %v261 = vsel %vm259, %v225, 0
    %v264 = vsel %vm259, %v226, 0
    %v267 = vsel %vm259, %v256, 0
    %v270 = vsel %vm259, %v258, 0
    %272 = vmatprep.subr.bf16.mxu0 0
    %273 = vmatpush1.bf16.xpose.msra.mxu0 %v267
    %274 = vmatprep.subr.bf16.mxu0 0
    %275 = vmatpush1.bf16.xpose.msra.mxu0 %v270
    %276 = vmatprep.subr.bf16.mxu0 0
    %277 = vmatpush1.bf16.xpose.msra.mxu0 0
    %278 = vmatprep.subr.bf16.mxu0 0
    %279 = vmatpush1.bf16.xpose.msra.mxu0 0
    %280 = vmatprep.subr.bf16.mxu0 0
    %281 = vmatpush1.bf16.xpose.msra.mxu0 0
    %282 = vmatprep.subr.bf16.mxu0 0
    %283 = vmatpush1.bf16.xpose.msra.mxu0 0
    %284 = vmatprep.subr.bf16.mxu0 0
    %285 = vmatpush1.bf16.xpose.msra.mxu0 0
    %286 = vmatprep.subr.bf16.mxu0 0
    %287 = vmatpush1.bf16.xpose.msra.mxu0 0
    %288 = vmatprep.subr.bf16.mxu0 0
    %289 = vmatpush1.bf16.xpose.msra.mxu0 0
    %290 = vmatprep.subr.bf16.mxu0 0
    %291 = vmatpush1.bf16.xpose.msra.mxu0 0
    %292 = vmatprep.subr.bf16.mxu0 0
    %293 = vmatpush1.bf16.xpose.msra.mxu0 0
    %294 = vmatprep.subr.bf16.mxu0 0
    %295 = vmatpush1.bf16.xpose.msra.mxu0 0
    %296 = vmatprep.subr.bf16.mxu0 0
    %297 = vmatpush1.bf16.xpose.msra.mxu0 0
    %298 = vmatprep.subr.bf16.mxu0 0
    %299 = vmatpush1.bf16.xpose.msra.mxu0 0
    %300 = vmatprep.subr.bf16.mxu0 0
    %301 = vmatpush1.bf16.xpose.msra.mxu0 0
    %302 = vmatprep.subr.bf16.mxu0 0
    %303 = vmatpush1.bf16.xpose.msra.mxu0 0
    %304 = vmatprep.mubr.bf16.mxu0 0
    %305 = vmatmul.mubr.bf16.gmra.mrb[0].mxu0 %v261
    %v306 = vpop.f32.mrb[0].mxu0
    %v307 = vadd.f32 0.0, %v306
    %v308 = vpop.f32.mrb[0].mxu0
    %v309 = vpop.f32.mrb[0].mxu0
    %v310 = vadd.f32 0.0, %v309
    %v311 = vpop.f32.mrb[0].mxu0
    %312 = vmatprep.mubr.bf16.mxu0 0
    %313 = vmatmul.mubr.bf16.gmra.mrb[0].mxu0 %v264
    %v314 = vpop.f32.mrb[0].mxu0
    %v315 = vadd.f32 0.0, %v314
    %v316 = vpop.f32.mrb[0].mxu0
    %v317 = vpop.f32.mrb[0].mxu0
    %v318 = vadd.f32 0.0, %v317
    %v319 = vpop.f32.mrb[0].mxu0
    %320 = vdwg.mxu0
    %323 = vrot.lane.b32.xlu0 %v227, 64
    %v324 = vpop.permute.xlu0 %323
    %325 = vrot.lane.b32.xlu0 %v228, 64
    %v326 = vpop.permute.xlu0 %325
    %v328 = vsel %vm259, %v227, 0
    %v331 = vsel %vm259, %v228, 0
    %v334 = vsel %vm259, %v324, 0
    %v337 = vsel %vm259, %v326, 0
    %339 = vmatprep.subr.bf16.mxu0 0
    %340 = vmatpush1.bf16.xpose.msra.mxu0 %v334
    %341 = vmatprep.subr.bf16.mxu0 0
    %342 = vmatpush1.bf16.xpose.msra.mxu0 %v337
    %343 = vmatprep.subr.bf16.mxu0 0
    %344 = vmatpush1.bf16.xpose.msra.mxu0 0
    %345 = vmatprep.subr.bf16.mxu0 0
    %346 = vmatpush1.bf16.xpose.msra.mxu0 0
    %347 = vmatprep.subr.bf16.mxu0 0
    %348 = vmatpush1.bf16.xpose.msra.mxu0 0
    %349 = vmatprep.subr.bf16.mxu0 0
    %350 = vmatpush1.bf16.xpose.msra.mxu0 0
    %351 = vmatprep.subr.bf16.mxu0 0
    %352 = vmatpush1.bf16.xpose.msra.mxu0 0
    %353 = vmatprep.subr.bf16.mxu0 0
    %354 = vmatpush1.bf16.xpose.msra.mxu0 0
    %355 = vmatprep.subr.bf16.mxu0 0
    %356 = vmatpush1.bf16.xpose.msra.mxu0 0
    %357 = vmatprep.subr.bf16.mxu0 0
    %358 = vmatpush1.bf16.xpose.msra.mxu0 0
    %359 = vmatprep.subr.bf16.mxu0 0
    %360 = vmatpush1.bf16.xpose.msra.mxu0 0
    %361 = vmatprep.subr.bf16.mxu0 0
    %362 = vmatpush1.bf16.xpose.msra.mxu0 0
    %363 = vmatprep.subr.bf16.mxu0 0
    %364 = vmatpush1.bf16.xpose.msra.mxu0 0
    %365 = vmatprep.subr.bf16.mxu0 0
    %366 = vmatpush1.bf16.xpose.msra.mxu0 0
    %367 = vmatprep.subr.bf16.mxu0 0
    %368 = vmatpush1.bf16.xpose.msra.mxu0 0
    %369 = vmatprep.subr.bf16.mxu0 0
    %370 = vmatpush1.bf16.xpose.msra.mxu0 0
    %371 = vmatprep.mubr.bf16.mxu0 0
    %372 = vmatmul.mubr.bf16.gmra.mrb[0].mxu0 %v328
    %v373 = vpop.f32.mrb[0].mxu0
    %v374 = vadd.f32 0.0, %v373
    %v375 = vpop.f32.mrb[0].mxu0
    %v376 = vpop.f32.mrb[0].mxu0
    %v377 = vadd.f32 0.0, %v376
    %v378 = vpop.f32.mrb[0].mxu0
    %379 = vmatprep.mubr.bf16.mxu0 0
    %380 = vmatmul.mubr.bf16.gmra.mrb[0].mxu0 %v331
    %v381 = vpop.f32.mrb[0].mxu0
    %v382 = vadd.f32 0.0, %v381
    %v383 = vpop.f32.mrb[0].mxu0
    %v384 = vpop.f32.mrb[0].mxu0
    %v385 = vadd.f32 0.0, %v384
    %v386 = vpop.f32.mrb[0].mxu0
    %387 = vdwg.mxu0
    %v388 = vmul.f32 %v307, 0.125
    %v389 = vmul.f32 %v310, 0.125
    %v390 = vmul.f32 %v315, 0.125
    %v391 = vmul.f32 %v318, 0.125
    %v392 = vmul.f32 %v374, 0.125
    %v393 = vmul.f32 %v377, 0.125
    %v394 = vmul.f32 %v382, 0.125
    %v395 = vmul.f32 %v385, 0.125
    %v396 = vadd.f32 %v388, %v60
    %v397 = vadd.f32 %v389, %v61
    %v398 = vadd.f32 %v390, %v62
    %v399 = vadd.f32 %v391, %v63
    %v400 = vadd.f32 %v392, %v60
    %v401 = vadd.f32 %v393, %v61
    %v402 = vadd.f32 %v394, %v62
    %v403 = vadd.f32 %v395, %v63
    %vm404 = vcmask 261120
    %v405 = vsel %vm404, %v396, -inf
    %406 = vmax.xlane.f32.xlu0 %v405
    %v407 = vpop.xlane.xlu0 %406
    %v408 = vsel %vm404, %v397, -inf
    %409 = vmax.xlane.f32.xlu0 %v408
    %v410 = vpop.xlane.xlu0 %409
    %v411 = vsel %vm404, %v398, -inf
    %412 = vmax.xlane.f32.xlu0 %v411
    %v413 = vpop.xlane.xlu0 %412
    %v414 = vsel %vm404, %v399, -inf
    %415 = vmax.xlane.f32.xlu0 %v414
    %v416 = vpop.xlane.xlu0 %415
    %v417 = vsel %vm404, %v400, -inf
    %418 = vmax.xlane.f32.xlu0 %v417
    %v419 = vpop.xlane.xlu0 %418
    %v420 = vsel %vm404, %v401, -inf
    %421 = vmax.xlane.f32.xlu0 %v420
    %v422 = vpop.xlane.xlu0 %421
    %v423 = vsel %vm404, %v402, -inf
    %424 = vmax.xlane.f32.xlu0 %v423
    %v425 = vpop.xlane.xlu0 %424
    %v426 = vsel %vm404, %v403, -inf
    %427 = vmax.xlane.f32.xlu0 %v426
    %v428 = vpop.xlane.xlu0 %427
    %v429 = vsub.f32 %v396, %v407
    %v430 = vsub.f32 %v397, %v410
    %v431 = vsub.f32 %v398, %v413
    %v432 = vsub.f32 %v399, %v416
    %v433 = vsub.f32 %v400, %v419
    %v434 = vsub.f32 %v401, %v422
    %v435 = vsub.f32 %v402, %v425
    %v436 = vsub.f32 %v403, %v428
    %v437 = vmul.f32 %v429, 1.442695
    %v438 = vpow.pop %v437
    %v439 = vmul.f32 %v430, 1.442695
    %v440 = vpow.pop %v439
    %v441 = vmul.f32 %v431, 1.442695
    %v442 = vpow.pop %v441
    %v443 = vmul.f32 %v432, 1.442695
    %v444 = vpow.pop %v443
    %v445 = vmul.f32 %v433, 1.442695
    %v446 = vpow.pop %v445
    %v447 = vmul.f32 %v434, 1.442695
    %v448 = vpow.pop %v447
    %v449 = vmul.f32 %v435, 1.442695
    %v450 = vpow.pop %v449
    %v451 = vmul.f32 %v436, 1.442695
    %v452 = vpow.pop %v451
    %v453 = vsel %vm404, %v438, 0.0
    %454 = vadd.xlane.f32.xlu0 %v453
    %v455 = vpop.xlane.xlu0 %454
    %v456 = vsel %vm404, %v440, 0.0
    %457 = vadd.xlane.f32.xlu0 %v456
    %v458 = vpop.xlane.xlu0 %457
    %v459 = vsel %vm404, %v442, 0.0
    %460 = vadd.xlane.f32.xlu0 %v459
    %v461 = vpop.xlane.xlu0 %460
    %v462 = vsel %vm404, %v444, 0.0
    %463 = vadd.xlane.f32.xlu0 %v462
    %v464 = vpop.xlane.xlu0 %463
    %v465 = vsel %vm404, %v446, 0.0
    %466 = vadd.xlane.f32.xlu0 %v465
    %v467 = vpop.xlane.xlu0 %466
    %v468 = vsel %vm404, %v448, 0.0
    %469 = vadd.xlane.f32.xlu0 %v468
    %v470 = vpop.xlane.xlu0 %469
    %v471 = vsel %vm404, %v450, 0.0
    %472 = vadd.xlane.f32.xlu0 %v471
    %v473 = vpop.xlane.xlu0 %472
    %v474 = vsel %vm404, %v452, 0.0
    %475 = vadd.xlane.f32.xlu0 %v474
    %v476 = vpop.xlane.xlu0 %475
    %v477 = vrcp.pop %v455
    %v478 = vrcp.pop %v458
    %v479 = vrcp.pop %v461
    %v480 = vrcp.pop %v464
    %v481 = vrcp.pop %v467
    %v482 = vrcp.pop %v470
    %v483 = vrcp.pop %v473
    %v484 = vrcp.pop %v476
    %v485 = vmul.f32 %v438, %v477
    %v486 = vmul.f32 %v440, %v478
    %v487 = vmul.f32 %v442, %v479
    %v488 = vmul.f32 %v444, %v480
    %v489 = vmul.f32 %v446, %v481
    %v490 = vmul.f32 %v448, %v482
    %v491 = vmul.f32 %v450, %v483
    %v492 = vmul.f32 %v452, %v484
    %v493 = vpack.c.bf16 %v486, %v485
    %v494 = vpack.c.bf16 %v488, %v487
    %v495 = vpack.c.bf16 %v490, %v489
    %v496 = vpack.c.bf16 %v492, %v491
    %v498 = vsel %vm404, %v493, 0
    %v501 = vsel %vm404, %v494, 0
    %503 = vmatprep.subr.bf16.mxu0 0
    %504 = vmatpush1.bf16.msra.mxu0 %v249
    %505 = vmatprep.subr.bf16.mxu0 0
    %506 = vmatpush1.bf16.msra.mxu0 %v250
    %507 = vmatprep.subr.bf16.mxu0 0
    %508 = vmatpush1.bf16.msra.mxu0 0
    %509 = vmatprep.subr.bf16.mxu0 0
    %510 = vmatpush1.bf16.msra.mxu0 0
    %511 = vmatprep.subr.bf16.mxu0 0
    %512 = vmatpush1.bf16.msra.mxu0 0
    %513 = vmatprep.subr.bf16.mxu0 0
    %514 = vmatpush1.bf16.msra.mxu0 0
    %515 = vmatprep.subr.bf16.mxu0 0
    %516 = vmatpush1.bf16.msra.mxu0 0
    %517 = vmatprep.subr.bf16.mxu0 0
    %518 = vmatpush1.bf16.msra.mxu0 0
    %519 = vmatprep.subr.bf16.mxu0 0
    %520 = vmatpush1.bf16.msra.mxu0 0
    %521 = vmatprep.subr.bf16.mxu0 0
    %522 = vmatpush1.bf16.msra.mxu0 0
    %523 = vmatprep.subr.bf16.mxu0 0
    %524 = vmatpush1.bf16.msra.mxu0 0
    %525 = vmatprep.subr.bf16.mxu0 0
    %526 = vmatpush1.bf16.msra.mxu0 0
    %527 = vmatprep.subr.bf16.mxu0 0
    %528 = vmatpush1.bf16.msra.mxu0 0
    %529 = vmatprep.subr.bf16.mxu0 0
    %530 = vmatpush1.bf16.msra.mxu0 0
    %531 = vmatprep.subr.bf16.mxu0 0
    %532 = vmatpush1.bf16.msra.mxu0 0
    %533 = vmatprep.subr.bf16.mxu0 0
    %534 = vmatpush1.bf16.msra.mxu0 0
    %535 = vmatprep.mubr.bf16.mxu0 0
    %536 = vmatmul.mubr.bf16.gmra.mrb[0].mxu0 %v498
    %v537 = vpop.f32.mrb[0].mxu0
    %v538 = vadd.f32 0.0, %v537
    %v539 = vpop.f32.mrb[0].mxu0
    %v540 = vpop.f32.mrb[0].mxu0
    %v541 = vadd.f32 0.0, %v540
    %v542 = vpop.f32.mrb[0].mxu0
    %543 = vmatprep.mubr.bf16.mxu0 0
    %544 = vmatmul.mubr.bf16.gmra.mrb[0].mxu0 %v501
    %v545 = vpop.f32.mrb[0].mxu0
    %v546 = vadd.f32 0.0, %v545
    %v547 = vpop.f32.mrb[0].mxu0
    %v548 = vpop.f32.mrb[0].mxu0
    %v549 = vadd.f32 0.0, %v548
    %v550 = vpop.f32.mrb[0].mxu0
    %551 = vdwg.mxu0
    %v553 = vsel %vm404, %v495, 0
    %v556 = vsel %vm404, %v496, 0
    %558 = vmatprep.subr.bf16.mxu0 0
    %559 = vmatpush1.bf16.msra.mxu0 %v251
    %560 = vmatprep.subr.bf16.mxu0 0
    %561 = vmatpush1.bf16.msra.mxu0 %v252
    %562 = vmatprep.subr.bf16.mxu0 0
    %563 = vmatpush1.bf16.msra.mxu0 0
    %564 = vmatprep.subr.bf16.mxu0 0
    %565 = vmatpush1.bf16.msra.mxu0 0
    %566 = vmatprep.subr.bf16.mxu0 0
    %567 = vmatpush1.bf16.msra.mxu0 0
    %568 = vmatprep.subr.bf16.mxu0 0
    %569 = vmatpush1.bf16.msra.mxu0 0
    %570 = vmatprep.subr.bf16.mxu0 0
    %571 = vmatpush1.bf16.msra.mxu0 0
    %572 = vmatprep.subr.bf16.mxu0 0
    %573 = vmatpush1.bf16.msra.mxu0 0
    %574 = vmatprep.subr.bf16.mxu0 0
    %575 = vmatpush1.bf16.msra.mxu0 0
    %576 = vmatprep.subr.bf16.mxu0 0
    %577 = vmatpush1.bf16.msra.mxu0 0
    %578 = vmatprep.subr.bf16.mxu0 0
    %579 = vmatpush1.bf16.msra.mxu0 0
    %580 = vmatprep.subr.bf16.mxu0 0
    %581 = vmatpush1.bf16.msra.mxu0 0
    %582 = vmatprep.subr.bf16.mxu0 0
    %583 = vmatpush1.bf16.msra.mxu0 0
    %584 = vmatprep.subr.bf16.mxu0 0
    %585 = vmatpush1.bf16.msra.mxu0 0
    %586 = vmatprep.subr.bf16.mxu0 0
    %587 = vmatpush1.bf16.msra.mxu0 0
    %588 = vmatprep.subr.bf16.mxu0 0
    %589 = vmatpush1.bf16.msra.mxu0 0
    %590 = vmatprep.mubr.bf16.mxu0 0
    %591 = vmatmul.mubr.bf16.gmra.mrb[0].mxu0 %v553
    %v592 = vpop.f32.mrb[0].mxu0
    %v593 = vadd.f32 0.0, %v592
    %v594 = vpop.f32.mrb[0].mxu0
    %v595 = vpop.f32.mrb[0].mxu0
    %v596 = vadd.f32 0.0, %v595
    %v597 = vpop.f32.mrb[0].mxu0
    %598 = vmatprep.mubr.bf16.mxu0 0
    %599 = vmatmul.mubr.bf16.gmra.mrb[0].mxu0 %v556
    %v600 = vpop.f32.mrb[0].mxu0
    %v601 = vadd.f32 0.0, %v600
    %v602 = vpop.f32.mrb[0].mxu0
    %v603 = vpop.f32.mrb[0].mxu0
    %v604 = vadd.f32 0.0, %v603
    %v605 = vpop.f32.mrb[0].mxu0
    %606 = vdwg.mxu0
    %609 = vrot.lane.b32.xlu0 %v541, 16
    %v610 = vpop.permute.xlu0 %609
    %611 = vrot.lane.b32.xlu0 %v596, 16
    %v612 = vpop.permute.xlu0 %611
    %617 = vrot.lane.b32.xlu0 %v546, 32
    %v618 = vpop.permute.xlu0 %617
    %619 = vrot.lane.b32.xlu0 %v601, 32
    %v620 = vpop.permute.xlu0 %619
    %625 = vrot.lane.b32.xlu0 %v549, 48
    %v626 = vpop.permute.xlu0 %625
    %627 = vrot.lane.b32.xlu0 %v604, 48
    %v628 = vpop.permute.xlu0 %627
    %v631 = vsel %vm259, %v538, %v610
    %v632 = vsel %vm259, %v593, %v612
    %v633 = vsel %vm404, %v631, %v618
    %v634 = vsel %vm404, %v632, %v620
    %vm635 = vcmask 392192
    %v636 = vsel %vm635, %v633, %v626
    %v637 = vsel %vm635, %v634, %v628
    %v638 = vpack.c.bf16 %v637, %v636
    %v639 = vld [vmem:[%s5] sm:$0xf]
    %v640 = vld [vmem:[%s5 + $0x4] sm:$0xf]
    %v641 = vld [vmem:[%s5 + $0x8] sm:$0xf]
    %v642 = vld [vmem:[%s5 + $0xc] sm:$0xf]
    %v643 = vld [vmem:[%s5 + $0x10] sm:$0xf]
    %v644 = vld [vmem:[%s5 + $0x14] sm:$0xf]
    %v645 = vld [vmem:[%s5 + $0x18] sm:$0xf]
    %v646 = vld [vmem:[%s5 + $0x1c] sm:$0xf]
    %v647 = vld [vmem:[%s6] sm:$0x1]
    %v649 = vlaneseq
    %v650 = vshrl.u32 %v649, 7
    %v651 = vsub.s32 0, %v650
    %v652 = vrot.slane %v647, %v651
    %v662 = vunpack.c.l.b16 %v639
    %v663 = vunpack.c.l.b16 %v640
    %v664 = vunpack.c.l.b16 %v641
    %v665 = vunpack.c.l.b16 %v642
    %v666 = vunpack.c.l.b16 %v643
    %v667 = vunpack.c.l.b16 %v644
    %v668 = vunpack.c.l.b16 %v645
    %v669 = vunpack.c.l.b16 %v646
    %v670 = vpack.c.b16 %v663, %v662
    %v671 = vpack.c.b16 %v665, %v664
    %v672 = vpack.c.b16 %v667, %v666
    %v673 = vpack.c.b16 %v669, %v668
    %v679 = vsel %vm66, %v638, 0
    %681 = vmatprep.subr.bf16.mxu0 0
    %682 = vmatpush1.bf16.msra.mxu0 %v670
    %683 = vmatprep.subr.bf16.mxu0 0
    %684 = vmatpush1.bf16.msra.mxu0 %v671
    %685 = vmatprep.subr.bf16.mxu0 0
    %686 = vmatpush1.bf16.msra.mxu0 %v672
    %687 = vmatprep.subr.bf16.mxu0 0
    %688 = vmatpush1.bf16.msra.mxu0 %v673
    %689 = vmatprep.subr.bf16.mxu0 0
    %690 = vmatpush1.bf16.msra.mxu0 0
    %691 = vmatprep.subr.bf16.mxu0 0
    %692 = vmatpush1.bf16.msra.mxu0 0
    %693 = vmatprep.subr.bf16.mxu0 0
    %694 = vmatpush1.bf16.msra.mxu0 0
    %695 = vmatprep.subr.bf16.mxu0 0
    %696 = vmatpush1.bf16.msra.mxu0 0
    %697 = vmatprep.subr.bf16.mxu0 0
    %698 = vmatpush1.bf16.msra.mxu0 0
    %699 = vmatprep.subr.bf16.mxu0 0
    %700 = vmatpush1.bf16.msra.mxu0 0
    %701 = vmatprep.subr.bf16.mxu0 0
    %702 = vmatpush1.bf16.msra.mxu0 0
    %703 = vmatprep.subr.bf16.mxu0 0
    %704 = vmatpush1.bf16.msra.mxu0 0
    %705 = vmatprep.subr.bf16.mxu0 0
    %706 = vmatpush1.bf16.msra.mxu0 0
    %707 = vmatprep.subr.bf16.mxu0 0
    %708 = vmatpush1.bf16.msra.mxu0 0
    %709 = vmatprep.subr.bf16.mxu0 0
    %710 = vmatpush1.bf16.msra.mxu0 0
    %711 = vmatprep.subr.bf16.mxu0 0
    %712 = vmatpush1.bf16.msra.mxu0 0
    %713 = vmatprep.mubr.bf16.mxu0 0
    %714 = vmatmul.mubr.bf16.gmra.mrb[0].mxu0 %v679
    %v715 = vpop.f32.mrb[0].mxu0
    %v716 = vadd.f32 %v652, %v715
    %v717 = vpop.f32.mrb[0].mxu0
    %v718 = vpop.f32.mrb[0].mxu0
    %v719 = vadd.f32 %v652, %v718
    %v720 = vpop.f32.mrb[0].mxu0
    %721 = vdwg.mxu0
    %v722 = vadd.f32 %v58, %v716
    %v723 = vadd.f32 %v59, %v719
    %v724 = vld [vmem:[%s7] sm:$0x1]
    %v725 = vld [vmem:[%s8] sm:$0x1]
    %v726 = vsel %vm66, %v722, 0.0
    %727 = vadd.xlane.f32.xlu0 %v726
    %v728 = vpop.xlane.xlu0 %727
    %v729 = vsel %vm66, %v723, 0.0
    %730 = vadd.xlane.f32.xlu0 %v729
    %v731 = vpop.xlane.xlu0 %730
    %v732 = vmul.f32 %v728, %v73
    %v733 = vmul.f32 %v731, %v73
    %v734 = vsub.f32 %v722, %v732
    %v735 = vsub.f32 %v723, %v733
    %v736 = vmul.f32 %v734, %v734
    %v737 = vmul.f32 %v735, %v735
    %v738 = vsel %vm66, %v736, 0.0
    %739 = vadd.xlane.f32.xlu0 %v738
    %v740 = vpop.xlane.xlu0 %739
    %v741 = vsel %vm66, %v737, 0.0
    %742 = vadd.xlane.f32.xlu0 %v741
    %v743 = vpop.xlane.xlu0 %742
    %v744 = vmul.f32 %v740, %v73
    %v745 = vmul.f32 %v743, %v73
    %v746 = vadd.f32 %v744, 1e-05
    %v747 = vadd.f32 %v745, 1e-05
    %v748 = vrsqrt.pop %v746
    %v749 = vrsqrt.pop %v747
    %v750 = vmul.f32 %v734, %v748
    %v751 = vmul.f32 %v735, %v749
    %v753 = vlaneseq
    %v754 = vshrl.u32 %v753, 7
    %v755 = vsub.s32 0, %v754
    %v756 = vrot.slane %v724, %v755
    %v758 = vmul.f32 %v750, %v756
    %v759 = vmul.f32 %v751, %v756
    %v761 = vlaneseq
    %v762 = vshrl.u32 %v761, 7
    %v763 = vsub.s32 0, %v762
    %v764 = vrot.slane %v725, %v763
    %v766 = vadd.f32 %v758, %v764
    %v767 = vadd.f32 %v759, %v764
    %v768 = vpack.c.bf16 %v767, %v766
    %v769 = vld [vmem:[%s9] sm:$0xff]
    %v770 = vld [vmem:[%s9 + $0x8] sm:$0xff]
    %v771 = vld [vmem:[%s9 + $0x10] sm:$0xff]
    %v772 = vld [vmem:[%s9 + $0x18] sm:$0xff]
    %v773 = vld [vmem:[%s9 + $0x20] sm:$0xff]
    %v774 = vld [vmem:[%s9 + $0x28] sm:$0xff]
    %v775 = vld [vmem:[%s9 + $0x30] sm:$0xff]
    %v776 = vld [vmem:[%s9 + $0x38] sm:$0xff]
    %v777 = vld [vmem:[%s10] sm:$0x3]
    %v779 = vlaneseq
    %v780 = vshrl.u32 %v779, 7
    %v781 = vsub.s32 0, %v780
    %v782 = vrot.slane %v777, %v781
    %v783 = vlaneseq
    %v784 = vshrl.u32 %v783, 7
    %v785 = vsub.s32 1, %v784
    %v786 = vrot.slane %v777, %v785
    %v797 = vunpack.c.l.b16 %v769
    %v798 = vunpack.c.h.b16 %v769
    %v799 = vunpack.c.l.b16 %v770
    %v800 = vunpack.c.h.b16 %v770
    %v801 = vunpack.c.l.b16 %v771
    %v802 = vunpack.c.h.b16 %v771
    %v803 = vunpack.c.l.b16 %v772
    %v804 = vunpack.c.h.b16 %v772
    %v805 = vunpack.c.l.b16 %v773
    %v806 = vunpack.c.h.b16 %v773
    %v807 = vunpack.c.l.b16 %v774
    %v808 = vunpack.c.h.b16 %v774
    %v809 = vunpack.c.l.b16 %v775
    %v810 = vunpack.c.h.b16 %v775
    %v811 = vunpack.c.l.b16 %v776
    %v812 = vunpack.c.h.b16 %v776
    %v813 = vpack.c.b16 %v799, %v797
    %v814 = vpack.c.b16 %v800, %v798
    %v815 = vpack.c.b16 %v803, %v801
    %v816 = vpack.c.b16 %v804, %v802
    %v817 = vpack.c.b16 %v807, %v805
    %v818 = vpack.c.b16 %v808, %v806
    %v819 = vpack.c.b16 %v811, %v809
    %v820 = vpack.c.b16 %v812, %v810
    %v830 = vsel %vm66, %v768, 0
    %832 = vmatprep.subr.bf16.mxu0 %v814
    %833 = vmatpush1.bf16.msra.mxu0 %v813
    %834 = vmatprep.subr.bf16.mxu0 %v816
    %835 = vmatpush1.bf16.msra.mxu0 %v815
    %836 = vmatprep.subr.bf16.mxu0 %v818
    %837 = vmatpush1.bf16.msra.mxu0 %v817
    %838 = vmatprep.subr.bf16.mxu0 %v820
    %839 = vmatpush1.bf16.msra.mxu0 %v819
    %840 = vmatprep.subr.bf16.mxu0 0
    %841 = vmatpush1.bf16.msra.mxu0 0
    %842 = vmatprep.subr.bf16.mxu0 0
    %843 = vmatpush1.bf16.msra.mxu0 0
    %844 = vmatprep.subr.bf16.mxu0 0
    %845 = vmatpush1.bf16.msra.mxu0 0
    %846 = vmatprep.subr.bf16.mxu0 0
    %847 = vmatpush1.bf16.msra.mxu0 0
    %848 = vmatprep.subr.bf16.mxu0 0
    %849 = vmatpush1.bf16.msra.mxu0 0
    %850 = vmatprep.subr.bf16.mxu0 0
    %851 = vmatpush1.bf16.msra.mxu0 0
    %852 = vmatprep.subr.bf16.mxu0 0
    %853 = vmatpush1.bf16.msra.mxu0 0
    %854 = vmatprep.subr.bf16.mxu0 0
    %855 = vmatpush1.bf16.msra.mxu0 0
    %856 = vmatprep.subr.bf16.mxu0 0
    %857 = vmatpush1.bf16.msra.mxu0 0
    %858 = vmatprep.subr.bf16.mxu0 0
    %859 = vmatpush1.bf16.msra.mxu0 0
    %860 = vmatprep.subr.bf16.mxu0 0
    %861 = vmatpush1.bf16.msra.mxu0 0
    %862 = vmatprep.subr.bf16.mxu0 0
    %863 = vmatpush1.bf16.msra.mxu0 0
    %864 = vmatprep.mubr.bf16.mxu0 0
    %865 = vmatmul.mubr.bf16.gmra.mrb[0].mxu0 %v830
    %v866 = vpop.f32.mrb[0].mxu0
    %v867 = vadd.f32 %v782, %v866
    %v868 = vpop.f32.mrb[0].mxu0
    %v869 = vadd.f32 %v786, %v868
    %v870 = vpop.f32.mrb[0].mxu0
    %v871 = vadd.f32 %v782, %v870
    %v872 = vpop.f32.mrb[0].mxu0
    %v873 = vadd.f32 %v786, %v872
    %874 = vdwg.mxu0
    %v875 = vmax.f32 %v867, 0.0
    %v876 = vmax.f32 %v869, 0.0
    %v877 = vmax.f32 %v871, 0.0
    %v878 = vmax.f32 %v873, 0.0
    %v879 = vpack.c.bf16 %v877, %v875
    %v880 = vpack.c.bf16 %v878, %v876
    %v881 = vld [vmem:[%s11] sm:$0xf]
    %v882 = vld [vmem:[%s11 + $0x4] sm:$0xf]
    %v883 = vld [vmem:[%s11 + $0x8] sm:$0xf]
    %v884 = vld [vmem:[%s11 + $0xc] sm:$0xf]
    %v885 = vld [vmem:[%s11 + $0x10] sm:$0xf]
    %v886 = vld [vmem:[%s11 + $0x14] sm:$0xf]
    %v887 = vld [vmem:[%s11 + $0x18] sm:$0xf]
    %v888 = vld [vmem:[%s11 + $0x1c] sm:$0xf]
    %v889 = vld [vmem:[%s11 + $0x20] sm:$0xf]
    %v890 = vld [vmem:[%s11 + $0x24] sm:$0xf]
    %v891 = vld [vmem:[%s11 + $0x28] sm:$0xf]
    %v892 = vld [vmem:[%s11 + $0x2c] sm:$0xf]
    %v893 = vld [vmem:[%s11 + $0x30] sm:$0xf]
    %v894 = vld [vmem:[%s11 + $0x34] sm:$0xf]
    %v895 = vld [vmem:[%s11 + $0x38] sm:$0xf]
    %v896 = vld [vmem:[%s11 + $0x3c] sm:$0xf]
    %v897 = vld [vmem:[%s11 + $0x40] sm:$0xf]
    %v898 = vld [vmem:[%s11 + $0x44] sm:$0xf]
    %v899 = vld [vmem:[%s11 + $0x48] sm:$0xf]
    %v900 = vld [vmem:[%s11 + $0x4c] sm:$0xf]
    %v901 = vld [vmem:[%s11 + $0x50] sm:$0xf]
    %v902 = vld [vmem:[%s11 + $0x54] sm:$0xf]
    %v903 = vld [vmem:[%s11 + $0x58] sm:$0xf]
    %v904 = vld [vmem:[%s11 + $0x5c] sm:$0xf]
    %v905 = vld [vmem:[%s11 + $0x60] sm:$0xf]
    %v906 = vld [vmem:[%s11 + $0x64] sm:$0xf]
    %v907 = vld [vmem:[%s11 + $0x68] sm:$0xf]
    %v908 = vld [vmem:[%s11 + $0x6c] sm:$0xf]
    %v909 = vld [vmem:[%s11 + $0x70] sm:$0xf]
    %v910 = vld [vmem:[%s11 + $0x74] sm:$0xf]
    %v911 = vld [vmem:[%s11 + $0x78] sm:$0xf]
    %v912 = vld [vmem:[%s11 + $0x7c] sm:$0xf]
    %v913 = vld [vmem:[%s12] sm:$0x1]
    %v915 = vlaneseq
    %v916 = vshrl.u32 %v915, 7
    %v917 = vsub.s32 0, %v916
    %v918 = vrot.slane %v913, %v917
    %v952 = vunpack.c.l.b16 %v881
    %v953 = vunpack.c.l.b16 %v882
    %v954 = vunpack.c.l.b16 %v883
    %v955 = vunpack.c.l.b16 %v884
    %v956 = vunpack.c.l.b16 %v885
    %v957 = vunpack.c.l.b16 %v886
    %v958 = vunpack.c.l.b16 %v887
    %v959 = vunpack.c.l.b16 %v888
    %v960 = vunpack.c.l.b16 %v889
    %v961 = vunpack.c.l.b16 %v890
    %v962 = vunpack.c.l.b16 %v891
    %v963 = vunpack.c.l.b16 %v892
    %v964 = vunpack.c.l.b16 %v893
    %v965 = vunpack.c.l.b16 %v894
    %v966 = vunpack.c.l.b16 %v895
    %v967 = vunpack.c.l.b16 %v896
    %v968 = vunpack.c.l.b16 %v897
    %v969 = vunpack.c.l.b16 %v898
    %v970 = vunpack.c.l.b16 %v899
    %v971 = vunpack.c.l.b16 %v900
    %v972 = vunpack.c.l.b16 %v901
    %v973 = vunpack.c.l.b16 %v902
    %v974 = vunpack.c.l.b16 %v903
    %v975 = vunpack.c.l.b16 %v904
    %v976 = vunpack.c.l.b16 %v905
    %v977 = vunpack.c.l.b16 %v906
    %v978 = vunpack.c.l.b16 %v907
    %v979 = vunpack.c.l.b16 %v908
    %v980 = vunpack.c.l.b16 %v909
    %v981 = vunpack.c.l.b16 %v910
    %v982 = vunpack.c.l.b16 %v911
    %v983 = vunpack.c.l.b16 %v912
    %v984 = vpack.c.b16 %v953, %v952
    %v985 = vpack.c.b16 %v955, %v954
    %v986 = vpack.c.b16 %v957, %v956
    %v987 = vpack.c.b16 %v959, %v958
    %v988 = vpack.c.b16 %v961, %v960
    %v989 = vpack.c.b16 %v963, %v962
    %v990 = vpack.c.b16 %v965, %v964
    %v991 = vpack.c.b16 %v967, %v966
    %v992 = vpack.c.b16 %v969, %v968
    %v993 = vpack.c.b16 %v971, %v970
    %v994 = vpack.c.b16 %v973, %v972
    %v995 = vpack.c.b16 %v975, %v974
    %v996 = vpack.c.b16 %v977, %v976
    %v997 = vpack.c.b16 %v979, %v978
    %v998 = vpack.c.b16 %v981, %v980
    %v999 = vpack.c.b16 %v983, %v982
    %1016 = vmatprep.subr.bf16.mxu0 0
    %1017 = vmatpush1.bf16.msra.mxu0 %v984
    %1018 = vmatprep.subr.bf16.mxu0 0
    %1019 = vmatpush1.bf16.msra.mxu0 %v985
    %1020 = vmatprep.subr.bf16.mxu0 0
    %1021 = vmatpush1.bf16.msra.mxu0 %v986
    %1022 = vmatprep.subr.bf16.mxu0 0
    %1023 = vmatpush1.bf16.msra.mxu0 %v987
    %1024 = vmatprep.subr.bf16.mxu0 0
    %1025 = vmatpush1.bf16.msra.mxu0 %v988
    %1026 = vmatprep.subr.bf16.mxu0 0
    %1027 = vmatpush1.bf16.msra.mxu0 %v989
    %1028 = vmatprep.subr.bf16.mxu0 0
    %1029 = vmatpush1.bf16.msra.mxu0 %v990
    %1030 = vmatprep.subr.bf16.mxu0 0
    %1031 = vmatpush1.bf16.msra.mxu0 %v991
    %1032 = vmatprep.subr.bf16.mxu0 0
    %1033 = vmatpush1.bf16.msra.mxu0 %v992
    %1034 = vmatprep.subr.bf16.mxu0 0
    %1035 = vmatpush1.bf16.msra.mxu0 %v993
    %1036 = vmatprep.subr.bf16.mxu0 0
    %1037 = vmatpush1.bf16.msra.mxu0 %v994
    %1038 = vmatprep.subr.bf16.mxu0 0
    %1039 = vmatpush1.bf16.msra.mxu0 %v995
    %1040 = vmatprep.subr.bf16.mxu0 0
    %1041 = vmatpush1.bf16.msra.mxu0 %v996
    %1042 = vmatprep.subr.bf16.mxu0 0
    %1043 = vmatpush1.bf16.msra.mxu0 %v997
    %1044 = vmatprep.subr.bf16.mxu0 0
    %1045 = vmatpush1.bf16.msra.mxu0 %v998
    %1046 = vmatprep.subr.bf16.mxu0 0
    %1047 = vmatpush1.bf16.msra.mxu0 %v999
    %1048 = vmatprep.mubr.bf16.mxu0 %v880
    %1049 = vmatmul.mubr.bf16.gmra.mrb[0].mxu0 %v879
    %v1050 = vpop.f32.mrb[0].mxu0
    %v1051 = vadd.f32 %v918, %v1050
    %v1052 = vpop.f32.mrb[0].mxu0
    %v1053 = vpop.f32.mrb[0].mxu0
    %v1054 = vadd.f32 %v918, %v1053
    %v1055 = vpop.f32.mrb[0].mxu0
    %1056 = vdwg.mxu0
    %v1057 = vadd.f32 %v722, %v1051
    %v1058 = vadd.f32 %v723, %v1054
    %s1059 = scalar_lea.vmem %s2, 1
    %v1060 = vld [vmem:[%s1059] sm:$0x1]
    %s1061 = scalar_lea.vmem %s3, 1
    %v1062 = vld [vmem:[%s1061] sm:$0x1]
    %v1063 = vsel %vm66, %v1057, 0.0
    %1064 = vadd.xlane.f32.xlu0 %v1063
    %v1065 = vpop.xlane.xlu0 %1064
    %v1066 = vsel %vm66, %v1058, 0.0
    %1067 = vadd.xlane.f32.xlu0 %v1066
    %v1068 = vpop.xlane.xlu0 %1067
    %v1069 = vmul.f32 %v1065, %v73
    %v1070 = vmul.f32 %v1068, %v73
    %v1071 = vsub.f32 %v1057, %v1069
    %v1072 = vsub.f32 %v1058, %v1070
    %v1073 = vmul.f32 %v1071, %v1071
    %v1074 = vmul.f32 %v1072, %v1072
    %v1075 = vsel %vm66, %v1073, 0.0
    %1076 = vadd.xlane.f32.xlu0 %v1075
    %v1077 = vpop.xlane.xlu0 %1076
    %v1078 = vsel %vm66, %v1074, 0.0
    %1079 = vadd.xlane.f32.xlu0 %v1078
    %v1080 = vpop.xlane.xlu0 %1079
    %v1081 = vmul.f32 %v1077, %v73
    %v1082 = vmul.f32 %v1080, %v73
    %v1083 = vadd.f32 %v1081, 1e-05
    %v1084 = vadd.f32 %v1082, 1e-05
    %v1085 = vrsqrt.pop %v1083
    %v1086 = vrsqrt.pop %v1084
    %v1087 = vmul.f32 %v1071, %v1085
    %v1088 = vmul.f32 %v1072, %v1086
    %v1090 = vlaneseq
    %v1091 = vshrl.u32 %v1090, 7
    %v1092 = vsub.s32 0, %v1091
    %v1093 = vrot.slane %v1060, %v1092
    %v1095 = vmul.f32 %v1087, %v1093
    %v1096 = vmul.f32 %v1088, %v1093
    %v1098 = vlaneseq
    %v1099 = vshrl.u32 %v1098, 7
    %v1100 = vsub.s32 0, %v1099
    %v1101 = vrot.slane %v1062, %v1100
    %v1103 = vadd.f32 %v1095, %v1101
    %v1104 = vadd.f32 %v1096, %v1101
    %v1105 = vpack.c.bf16 %v1104, %v1103
    %s1106 = scalar_lea.vmem %s4, 64
    %v1107 = vld [vmem:[%s1106] sm:$0xff]
    %v1108 = vld [vmem:[%s1106 + $0x8] sm:$0xff]
    %v1109 = vld [vmem:[%s1106 + $0x10] sm:$0xff]
    %v1110 = vld [vmem:[%s1106 + $0x18] sm:$0xff]
    %v1111 = vld [vmem:[%s1106 + $0x20] sm:$0xff]
    %v1112 = vld [vmem:[%s1106 + $0x28] sm:$0xff]
    %v1113 = vld [vmem:[%s1106 + $0x30] sm:$0xff]
    %v1114 = vld [vmem:[%s1106 + $0x38] sm:$0xff]
    %v1123 = vunpack.c.l.b16 %v1107
    %v1124 = vunpack.c.h.b16 %v1107
    %v1125 = vunpack.c.l.b16 %v1108
    %v1126 = vunpack.c.h.b16 %v1108
    %v1127 = vunpack.c.l.b16 %v1109
    %v1128 = vunpack.c.h.b16 %v1109
    %v1129 = vunpack.c.l.b16 %v1110
    %v1130 = vunpack.c.h.b16 %v1110
    %v1131 = vunpack.c.l.b16 %v1111
    %v1132 = vunpack.c.h.b16 %v1111
    %v1133 = vunpack.c.l.b16 %v1112
    %v1134 = vunpack.c.h.b16 %v1112
    %v1135 = vunpack.c.l.b16 %v1113
    %v1136 = vunpack.c.h.b16 %v1113
    %v1137 = vunpack.c.l.b16 %v1114
    %v1138 = vunpack.c.h.b16 %v1114
    %v1139 = vpack.c.b16 %v1125, %v1123
    %v1140 = vpack.c.b16 %v1126, %v1124
    %v1141 = vpack.c.b16 %v1129, %v1127
    %v1142 = vpack.c.b16 %v1130, %v1128
    %v1143 = vpack.c.b16 %v1133, %v1131
    %v1144 = vpack.c.b16 %v1134, %v1132
    %v1145 = vpack.c.b16 %v1137, %v1135
    %v1146 = vpack.c.b16 %v1138, %v1136
    %v1156 = vsel %vm66, %v1105, 0
    %1158 = vmatprep.subr.bf16.mxu0 %v1140
    %1159 = vmatpush1.bf16.msra.mxu0 %v1139
    %1160 = vmatprep.subr.bf16.mxu0 %v1142
    %1161 = vmatpush1.bf16.msra.mxu0 %v1141
    %1162 = vmatprep.subr.bf16.mxu0 %v1144
    %1163 = vmatpush1.bf16.msra.mxu0 %v1143
    %1164 = vmatprep.subr.bf16.mxu0 %v1146
    %1165 = vmatpush1.bf16.msra.mxu0 %v1145
    %1166 = vmatprep.subr.bf16.mxu0 0
    %1167 = vmatpush1.bf16.msra.mxu0 0
    %1168 = vmatprep.subr.bf16.mxu0 0
    %1169 = vmatpush1.bf16.msra.mxu0 0
    %1170 = vmatprep.subr.bf16.mxu0 0
    %1171 = vmatpush1.bf16.msra.mxu0 0
    %1172 = vmatprep.subr.bf16.mxu0 0
    %1173 = vmatpush1.bf16.msra.mxu0 0
    %1174 = vmatprep.subr.bf16.mxu0 0
    %1175 = vmatpush1.bf16.msra.mxu0 0
    %1176 = vmatprep.subr.bf16.mxu0 0
    %1177 = vmatpush1.bf16.msra.mxu0 0
    %1178 = vmatprep.subr.bf16.mxu0 0
    %1179 = vmatpush1.bf16.msra.mxu0 0
    %1180 = vmatprep.subr.bf16.mxu0 0
    %1181 = vmatpush1.bf16.msra.mxu0 0
    %1182 = vmatprep.subr.bf16.mxu0 0
    %1183 = vmatpush1.bf16.msra.mxu0 0
    %1184 = vmatprep.subr.bf16.mxu0 0
    %1185 = vmatpush1.bf16.msra.mxu0 0
    %1186 = vmatprep.subr.bf16.mxu0 0
    %1187 = vmatpush1.bf16.msra.mxu0 0
    %1188 = vmatprep.subr.bf16.mxu0 0
    %1189 = vmatpush1.bf16.msra.mxu0 0
    %1190 = vmatprep.mubr.bf16.mxu0 0
    %1191 = vmatmul.mubr.bf16.gmra.mrb[0].mxu0 %v1156
    %v1192 = vpop.f32.mrb[0].mxu0
    %v1193 = vadd.f32 0.0, %v1192
    %v1194 = vpop.f32.mrb[0].mxu0
    %v1195 = vadd.f32 0.0, %v1194
    %v1196 = vpop.f32.mrb[0].mxu0
    %v1197 = vadd.f32 0.0, %v1196
    %v1198 = vpop.f32.mrb[0].mxu0
    %v1199 = vadd.f32 0.0, %v1198
    %1200 = vdwg.mxu0
    %1203 = vrot.lane.b32.xlu0 %v1193, 112
    %v1204 = vpop.permute.xlu0 %1203
    %1205 = vrot.lane.b32.xlu0 %v1197, 112
    %v1206 = vpop.permute.xlu0 %1205
    %1209 = vrot.lane.b32.xlu0 %v1193, 96
    %v1210 = vpop.permute.xlu0 %1209
    %1211 = vrot.lane.b32.xlu0 %v1197, 96
    %v1212 = vpop.permute.xlu0 %1211
    %1215 = vrot.lane.b32.xlu0 %v1193, 80
    %v1216 = vpop.permute.xlu0 %1215
    %1217 = vrot.lane.b32.xlu0 %v1197, 80
    %v1218 = vpop.permute.xlu0 %1217
    %v1221 = vpack.c.bf16 %v1204, %v1193
    %v1222 = vpack.c.bf16 %v1216, %v1210
    %v1223 = vpack.c.bf16 %v1206, %v1197
    %v1224 = vpack.c.bf16 %v1218, %v1212
    %1227 = vrot.lane.b32.xlu0 %v1195, 112
    %v1228 = vpop.permute.xlu0 %1227
    %1229 = vrot.lane.b32.xlu0 %v1199, 112
    %v1230 = vpop.permute.xlu0 %1229
    %1233 = vrot.lane.b32.xlu0 %v1195, 96
    %v1234 = vpop.permute.xlu0 %1233
    %1235 = vrot.lane.b32.xlu0 %v1199, 96
    %v1236 = vpop.permute.xlu0 %1235
    %1239 = vrot.lane.b32.xlu0 %v1195, 80
    %v1240 = vpop.permute.xlu0 %1239
    %1241 = vrot.lane.b32.xlu0 %v1199, 80
    %v1242 = vpop.permute.xlu0 %1241
    %v1245 = vpack.c.bf16 %v1228, %v1195
    %v1246 = vpack.c.bf16 %v1240, %v1234
    %v1247 = vpack.c.bf16 %v1230, %v1199
    %v1248 = vpack.c.bf16 %v1242, %v1236
    %1251 = vrot.lane.b32.xlu0 %v1221, 64
    %v1252 = vpop.permute.xlu0 %1251
    %1253 = vrot.lane.b32.xlu0 %v1222, 64
    %v1254 = vpop.permute.xlu0 %1253
    %v1256 = vsel %vm259, %v1221, 0
    %v1259 = vsel %vm259, %v1222, 0
    %v1262 = vsel %vm259, %v1252, 0
    %v1265 = vsel %vm259, %v1254, 0
    %1267 = vmatprep.subr.bf16.mxu0 0
    %1268 = vmatpush1.bf16.xpose.msra.mxu0 %v1262
    %1269 = vmatprep.subr.bf16.mxu0 0
    %1270 = vmatpush1.bf16.xpose.msra.mxu0 %v1265
    %1271 = vmatprep.subr.bf16.mxu0 0
    %1272 = vmatpush1.bf16.xpose.msra.mxu0 0
    %1273 = vmatprep.subr.bf16.mxu0 0
    %1274 = vmatpush1.bf16.xpose.msra.mxu0 0
    %1275 = vmatprep.subr.bf16.mxu0 0
    %1276 = vmatpush1.bf16.xpose.msra.mxu0 0
    %1277 = vmatprep.subr.bf16.mxu0 0
    %1278 = vmatpush1.bf16.xpose.msra.mxu0 0
    %1279 = vmatprep.subr.bf16.mxu0 0
    %1280 = vmatpush1.bf16.xpose.msra.mxu0 0
    %1281 = vmatprep.subr.bf16.mxu0 0
    %1282 = vmatpush1.bf16.xpose.msra.mxu0 0
    %1283 = vmatprep.subr.bf16.mxu0 0
    %1284 = vmatpush1.bf16.xpose.msra.mxu0 0
    %1285 = vmatprep.subr.bf16.mxu0 0
    %1286 = vmatpush1.bf16.xpose.msra.mxu0 0
    %1287 = vmatprep.subr.bf16.mxu0 0
    %1288 = vmatpush1.bf16.xpose.msra.mxu0 0
    %1289 = vmatprep.subr.bf16.mxu0 0
    %1290 = vmatpush1.bf16.xpose.msra.mxu0 0
    %1291 = vmatprep.subr.bf16.mxu0 0
    %1292 = vmatpush1.bf16.xpose.msra.mxu0 0
    %1293 = vmatprep.subr.bf16.mxu0 0
    %1294 = vmatpush1.bf16.xpose.msra.mxu0 0
    %1295 = vmatprep.subr.bf16.mxu0 0
    %1296 = vmatpush1.bf16.xpose.msra.mxu0 0
    %1297 = vmatprep.subr.bf16.mxu0 0
    %1298 = vmatpush1.bf16.xpose.msra.mxu0 0
    %1299 = vmatprep.mubr.bf16.mxu0 0
    %1300 = vmatmul.mubr.bf16.gmra.mrb[0].mxu0 %v1256
    %v1301 = vpop.f32.mrb[0].mxu0
    %v1302 = vadd.f32 0.0, %v1301
    %v1303 = vpop.f32.mrb[0].mxu0
    %v1304 = vpop.f32.mrb[0].mxu0
    %v1305 = vadd.f32 0.0, %v1304
    %v1306 = vpop.f32.mrb[0].mxu0
    %1307 = vmatprep.mubr.bf16.mxu0 0
    %1308 = vmatmul.mubr.bf16.gmra.mrb[0].mxu0 %v1259
    %v1309 = vpop.f32.mrb[0].mxu0
    %v1310 = vadd.f32 0.0, %v1309
    %v1311 = vpop.f32.mrb[0].mxu0
    %v1312 = vpop.f32.mrb[0].mxu0
    %v1313 = vadd.f32 0.0, %v1312
    %v1314 = vpop.f32.mrb[0].mxu0
    %1315 = vdwg.mxu0
    %1318 = vrot.lane.b32.xlu0 %v1223, 64
    %v1319 = vpop.permute.xlu0 %1318
    %1320 = vrot.lane.b32.xlu0 %v1224, 64
    %v1321 = vpop.permute.xlu0 %1320
    %v1323 = vsel %vm259, %v1223, 0
    %v1326 = vsel %vm259, %v1224, 0
    %v1329 = vsel %vm259, %v1319, 0
    %v1332 = vsel %vm259, %v1321, 0
    %1334 = vmatprep.subr.bf16.mxu0 0
    %1335 = vmatpush1.bf16.xpose.msra.mxu0 %v1329
    %1336 = vmatprep.subr.bf16.mxu0 0
    %1337 = vmatpush1.bf16.xpose.msra.mxu0 %v1332
    %1338 = vmatprep.subr.bf16.mxu0 0
    %1339 = vmatpush1.bf16.xpose.msra.mxu0 0
    %1340 = vmatprep.subr.bf16.mxu0 0
    %1341 = vmatpush1.bf16.xpose.msra.mxu0 0
    %1342 = vmatprep.subr.bf16.mxu0 0
    %1343 = vmatpush1.bf16.xpose.msra.mxu0 0
    %1344 = vmatprep.subr.bf16.mxu0 0
    %1345 = vmatpush1.bf16.xpose.msra.mxu0 0
    %1346 = vmatprep.subr.bf16.mxu0 0
    %1347 = vmatpush1.bf16.xpose.msra.mxu0 0
    %1348 = vmatprep.subr.bf16.mxu0 0
    %1349 = vmatpush1.bf16.xpose.msra.mxu0 0
    %1350 = vmatprep.subr.bf16.mxu0 0
    %1351 = vmatpush1.bf16.xpose.msra.mxu0 0
    %1352 = vmatprep.subr.bf16.mxu0 0
    %1353 = vmatpush1.bf16.xpose.msra.mxu0 0
    %1354 = vmatprep.subr.bf16.mxu0 0
    %1355 = vmatpush1.bf16.xpose.msra.mxu0 0
    %1356 = vmatprep.subr.bf16.mxu0 0
    %1357 = vmatpush1.bf16.xpose.msra.mxu0 0
    %1358 = vmatprep.subr.bf16.mxu0 0
    %1359 = vmatpush1.bf16.xpose.msra.mxu0 0
    %1360 = vmatprep.subr.bf16.mxu0 0
    %1361 = vmatpush1.bf16.xpose.msra.mxu0 0
    %1362 = vmatprep.subr.bf16.mxu0 0
    %1363 = vmatpush1.bf16.xpose.msra.mxu0 0
    %1364 = vmatprep.subr.bf16.mxu0 0
    %1365 = vmatpush1.bf16.xpose.msra.mxu0 0
    %1366 = vmatprep.mubr.bf16.mxu0 0
    %1367 = vmatmul.mubr.bf16.gmra.mrb[0].mxu0 %v1323
    %v1368 = vpop.f32.mrb[0].mxu0
    %v1369 = vadd.f32 0.0, %v1368
    %v1370 = vpop.f32.mrb[0].mxu0
    %v1371 = vpop.f32.mrb[0].mxu0
    %v1372 = vadd.f32 0.0, %v1371
    %v1373 = vpop.f32.mrb[0].mxu0
    %1374 = vmatprep.mubr.bf16.mxu0 0
    %1375 = vmatmul.mubr.bf16.gmra.mrb[0].mxu0 %v1326
    %v1376 = vpop.f32.mrb[0].mxu0
    %v1377 = vadd.f32 0.0, %v1376
    %v1378 = vpop.f32.mrb[0].mxu0
    %v1379 = vpop.f32.mrb[0].mxu0
    %v1380 = vadd.f32 0.0, %v1379
    %v1381 = vpop.f32.mrb[0].mxu0
    %1382 = vdwg.mxu0
    %v1383 = vmul.f32 %v1302, 0.125
    %v1384 = vmul.f32 %v1305, 0.125
    %v1385 = vmul.f32 %v1310, 0.125
    %v1386 = vmul.f32 %v1313, 0.125
    %v1387 = vmul.f32 %v1369, 0.125
    %v1388 = vmul.f32 %v1372, 0.125
    %v1389 = vmul.f32 %v1377, 0.125
    %v1390 = vmul.f32 %v1380, 0.125
    %v1391 = vadd.f32 %v1383, %v60
    %v1392 = vadd.f32 %v1384, %v61
    %v1393 = vadd.f32 %v1385, %v62
    %v1394 = vadd.f32 %v1386, %v63
    %v1395 = vadd.f32 %v1387, %v60
    %v1396 = vadd.f32 %v1388, %v61
    %v1397 = vadd.f32 %v1389, %v62
    %v1398 = vadd.f32 %v1390, %v63
    %v1399 = vsel %vm404, %v1391, -inf
    %1400 = vmax.xlane.f32.xlu0 %v1399
    %v1401 = vpop.xlane.xlu0 %1400
    %v1402 = vsel %vm404, %v1392, -inf
    %1403 = vmax.xlane.f32.xlu0 %v1402
    %v1404 = vpop.xlane.xlu0 %1403
    %v1405 = vsel %vm404, %v1393, -inf
    %1406 = vmax.xlane.f32.xlu0 %v1405
    %v1407 = vpop.xlane.xlu0 %1406
    %v1408 = vsel %vm404, %v1394, -inf
    %1409 = vmax.xlane.f32.xlu0 %v1408
    %v1410 = vpop.xlane.xlu0 %1409
    %v1411 = vsel %vm404, %v1395, -inf
    %1412 = vmax.xlane.f32.xlu0 %v1411
    %v1413 = vpop.xlane.xlu0 %1412
    %v1414 = vsel %vm404, %v1396, -inf
    %1415 = vmax.xlane.f32.xlu0 %v1414
    %v1416 = vpop.xlane.xlu0 %1415
    %v1417 = vsel %vm404, %v1397, -inf
    %1418 = vmax.xlane.f32.xlu0 %v1417
    %v1419 = vpop.xlane.xlu0 %1418
    %v1420 = vsel %vm404, %v1398, -inf
    %1421 = vmax.xlane.f32.xlu0 %v1420
    %v1422 = vpop.xlane.xlu0 %1421
    %v1423 = vsub.f32 %v1391, %v1401
    %v1424 = vsub.f32 %v1392, %v1404
    %v1425 = vsub.f32 %v1393, %v1407
    %v1426 = vsub.f32 %v1394, %v1410
    %v1427 = vsub.f32 %v1395, %v1413
    %v1428 = vsub.f32 %v1396, %v1416
    %v1429 = vsub.f32 %v1397, %v1419
    %v1430 = vsub.f32 %v1398, %v1422
    %v1431 = vmul.f32 %v1423, 1.442695
    %v1432 = vpow.pop %v1431
    %v1433 = vmul.f32 %v1424, 1.442695
    %v1434 = vpow.pop %v1433
    %v1435 = vmul.f32 %v1425, 1.442695
    %v1436 = vpow.pop %v1435
    %v1437 = vmul.f32 %v1426, 1.442695
    %v1438 = vpow.pop %v1437
    %v1439 = vmul.f32 %v1427, 1.442695
    %v1440 = vpow.pop %v1439
    %v1441 = vmul.f32 %v1428, 1.442695
    %v1442 = vpow.pop %v1441
    %v1443 = vmul.f32 %v1429, 1.442695
    %v1444 = vpow.pop %v1443
    %v1445 = vmul.f32 %v1430, 1.442695
    %v1446 = vpow.pop %v1445
    %v1447 = vsel %vm404, %v1432, 0.0
    %1448 = vadd.xlane.f32.xlu0 %v1447
    %v1449 = vpop.xlane.xlu0 %1448
    %v1450 = vsel %vm404, %v1434, 0.0
    %1451 = vadd.xlane.f32.xlu0 %v1450
    %v1452 = vpop.xlane.xlu0 %1451
    %v1453 = vsel %vm404, %v1436, 0.0
    %1454 = vadd.xlane.f32.xlu0 %v1453
    %v1455 = vpop.xlane.xlu0 %1454
    %v1456 = vsel %vm404, %v1438, 0.0
    %1457 = vadd.xlane.f32.xlu0 %v1456
    %v1458 = vpop.xlane.xlu0 %1457
    %v1459 = vsel %vm404, %v1440, 0.0
    %1460 = vadd.xlane.f32.xlu0 %v1459
    %v1461 = vpop.xlane.xlu0 %1460
    %v1462 = vsel %vm404, %v1442, 0.0
    %1463 = vadd.xlane.f32.xlu0 %v1462
    %v1464 = vpop.xlane.xlu0 %1463
    %v1465 = vsel %vm404, %v1444, 0.0
    %1466 = vadd.xlane.f32.xlu0 %v1465
    %v1467 = vpop.xlane.xlu0 %1466
    %v1468 = vsel %vm404, %v1446, 0.0
    %1469 = vadd.xlane.f32.xlu0 %v1468
    %v1470 = vpop.xlane.xlu0 %1469
    %v1471 = vrcp.pop %v1449
    %v1472 = vrcp.pop %v1452
    %v1473 = vrcp.pop %v1455
    %v1474 = vrcp.pop %v1458
    %v1475 = vrcp.pop %v1461
    %v1476 = vrcp.pop %v1464
    %v1477 = vrcp.pop %v1467
    %v1478 = vrcp.pop %v1470
    %v1479 = vmul.f32 %v1432, %v1471
    %v1480 = vmul.f32 %v1434, %v1472
    %v1481 = vmul.f32 %v1436, %v1473
    %v1482 = vmul.f32 %v1438, %v1474
    %v1483 = vmul.f32 %v1440, %v1475
    %v1484 = vmul.f32 %v1442, %v1476
    %v1485 = vmul.f32 %v1444, %v1477
    %v1486 = vmul.f32 %v1446, %v1478
    %v1487 = vpack.c.bf16 %v1480, %v1479
    %v1488 = vpack.c.bf16 %v1482, %v1481
    %v1489 = vpack.c.bf16 %v1484, %v1483
    %v1490 = vpack.c.bf16 %v1486, %v1485
    %v1492 = vsel %vm404, %v1487, 0
    %v1495 = vsel %vm404, %v1488, 0
    %1497 = vmatprep.subr.bf16.mxu0 0
    %1498 = vmatpush1.bf16.msra.mxu0 %v1245
    %1499 = vmatprep.subr.bf16.mxu0 0
    %1500 = vmatpush1.bf16.msra.mxu0 %v1246
    %1501 = vmatprep.subr.bf16.mxu0 0
    %1502 = vmatpush1.bf16.msra.mxu0 0
    %1503 = vmatprep.subr.bf16.mxu0 0
    %1504 = vmatpush1.bf16.msra.mxu0 0
    %1505 = vmatprep.subr.bf16.mxu0 0
    %1506 = vmatpush1.bf16.msra.mxu0 0
    %1507 = vmatprep.subr.bf16.mxu0 0
    %1508 = vmatpush1.bf16.msra.mxu0 0
    %1509 = vmatprep.subr.bf16.mxu0 0
    %1510 = vmatpush1.bf16.msra.mxu0 0
    %1511 = vmatprep.subr.bf16.mxu0 0
    %1512 = vmatpush1.bf16.msra.mxu0 0
    %1513 = vmatprep.subr.bf16.mxu0 0
    %1514 = vmatpush1.bf16.msra.mxu0 0
    %1515 = vmatprep.subr.bf16.mxu0 0
    %1516 = vmatpush1.bf16.msra.mxu0 0
    %1517 = vmatprep.subr.bf16.mxu0 0
    %1518 = vmatpush1.bf16.msra.mxu0 0
    %1519 = vmatprep.subr.bf16.mxu0 0
    %1520 = vmatpush1.bf16.msra.mxu0 0
    %1521 = vmatprep.subr.bf16.mxu0 0
    %1522 = vmatpush1.bf16.msra.mxu0 0
    %1523 = vmatprep.subr.bf16.mxu0 0
    %1524 = vmatpush1.bf16.msra.mxu0 0
    %1525 = vmatprep.subr.bf16.mxu0 0
    %1526 = vmatpush1.bf16.msra.mxu0 0
    %1527 = vmatprep.subr.bf16.mxu0 0
    %1528 = vmatpush1.bf16.msra.mxu0 0
    %1529 = vmatprep.mubr.bf16.mxu0 0
    %1530 = vmatmul.mubr.bf16.gmra.mrb[0].mxu0 %v1492
    %v1531 = vpop.f32.mrb[0].mxu0
    %v1532 = vadd.f32 0.0, %v1531
    %v1533 = vpop.f32.mrb[0].mxu0
    %v1534 = vpop.f32.mrb[0].mxu0
    %v1535 = vadd.f32 0.0, %v1534
    %v1536 = vpop.f32.mrb[0].mxu0
    %1537 = vmatprep.mubr.bf16.mxu0 0
    %1538 = vmatmul.mubr.bf16.gmra.mrb[0].mxu0 %v1495
    %v1539 = vpop.f32.mrb[0].mxu0
    %v1540 = vadd.f32 0.0, %v1539
    %v1541 = vpop.f32.mrb[0].mxu0
    %v1542 = vpop.f32.mrb[0].mxu0
    %v1543 = vadd.f32 0.0, %v1542
    %v1544 = vpop.f32.mrb[0].mxu0
    %1545 = vdwg.mxu0
    %v1547 = vsel %vm404, %v1489, 0
    %v1550 = vsel %vm404, %v1490, 0
    %1552 = vmatprep.subr.bf16.mxu0 0
    %1553 = vmatpush1.bf16.msra.mxu0 %v1247
    %1554 = vmatprep.subr.bf16.mxu0 0
    %1555 = vmatpush1.bf16.msra.mxu0 %v1248
    %1556 = vmatprep.subr.bf16.mxu0 0
    %1557 = vmatpush1.bf16.msra.mxu0 0
    %1558 = vmatprep.subr.bf16.mxu0 0
    %1559 = vmatpush1.bf16.msra.mxu0 0
    %1560 = vmatprep.subr.bf16.mxu0 0
    %1561 = vmatpush1.bf16.msra.mxu0 0
    %1562 = vmatprep.subr.bf16.mxu0 0
    %1563 = vmatpush1.bf16.msra.mxu0 0
    %1564 = vmatprep.subr.bf16.mxu0 0
    %1565 = vmatpush1.bf16.msra.mxu0 0
    %1566 = vmatprep.subr.bf16.mxu0 0
    %1567 = vmatpush1.bf16.msra.mxu0 0
    %1568 = vmatprep.subr.bf16.mxu0 0
    %1569 = vmatpush1.bf16.msra.mxu0 0
    %1570 = vmatprep.subr.bf16.mxu0 0
    %1571 = vmatpush1.bf16.msra.mxu0 0
    %1572 = vmatprep.subr.bf16.mxu0 0
    %1573 = vmatpush1.bf16.msra.mxu0 0
    %1574 = vmatprep.subr.bf16.mxu0 0
    %1575 = vmatpush1.bf16.msra.mxu0 0
    %1576 = vmatprep.subr.bf16.mxu0 0
    %1577 = vmatpush1.bf16.msra.mxu0 0
    %1578 = vmatprep.subr.bf16.mxu0 0
    %1579 = vmatpush1.bf16.msra.mxu0 0
    %1580 = vmatprep.subr.bf16.mxu0 0
    %1581 = vmatpush1.bf16.msra.mxu0 0
    %1582 = vmatprep.subr.bf16.mxu0 0
    %1583 = vmatpush1.bf16.msra.mxu0 0
    %1584 = vmatprep.mubr.bf16.mxu0 0
    %1585 = vmatmul.mubr.bf16.gmra.mrb[0].mxu0 %v1547
    %v1586 = vpop.f32.mrb[0].mxu0
    %v1587 = vadd.f32 0.0, %v1586
    %v1588 = vpop.f32.mrb[0].mxu0
    %v1589 = vpop.f32.mrb[0].mxu0
    %v1590 = vadd.f32 0.0, %v1589
    %v1591 = vpop.f32.mrb[0].mxu0
    %1592 = vmatprep.mubr.bf16.mxu0 0
    %1593 = vmatmul.mubr.bf16.gmra.mrb[0].mxu0 %v1550
    %v1594 = vpop.f32.mrb[0].mxu0
    %v1595 = vadd.f32 0.0, %v1594
    %v1596 = vpop.f32.mrb[0].mxu0
    %v1597 = vpop.f32.mrb[0].mxu0
    %v1598 = vadd.f32 0.0, %v1597
    %v1599 = vpop.f32.mrb[0].mxu0
    %1600 = vdwg.mxu0
    %1603 = vrot.lane.b32.xlu0 %v1535, 16
    %v1604 = vpop.permute.xlu0 %1603
    %1605 = vrot.lane.b32.xlu0 %v1590, 16
    %v1606 = vpop.permute.xlu0 %1605
    %1611 = vrot.lane.b32.xlu0 %v1540, 32
    %v1612 = vpop.permute.xlu0 %1611
    %1613 = vrot.lane.b32.xlu0 %v1595, 32
    %v1614 = vpop.permute.xlu0 %1613
    %1619 = vrot.lane.b32.xlu0 %v1543, 48
    %v1620 = vpop.permute.xlu0 %1619
    %1621 = vrot.lane.b32.xlu0 %v1598, 48
    %v1622 = vpop.permute.xlu0 %1621
    %v1625 = vsel %vm259, %v1532, %v1604
    %v1626 = vsel %vm259, %v1587, %v1606
    %v1627 = vsel %vm404, %v1625, %v1612
    %v1628 = vsel %vm404, %v1626, %v1614
    %v1629 = vsel %vm635, %v1627, %v1620
    %v1630 = vsel %vm635, %v1628, %v1622
    %v1631 = vpack.c.bf16 %v1630, %v1629
    %s1632 = scalar_lea.vmem %s5, 32
    %v1633 = vld [vmem:[%s1632] sm:$0xf]
    %v1634 = vld [vmem:[%s1632 + $0x4] sm:$0xf]
    %v1635 = vld [vmem:[%s1632 + $0x8] sm:$0xf]
    %v1636 = vld [vmem:[%s1632 + $0xc] sm:$0xf]
    %v1637 = vld [vmem:[%s1632 + $0x10] sm:$0xf]
    %v1638 = vld [vmem:[%s1632 + $0x14] sm:$0xf]
    %v1639 = vld [vmem:[%s1632 + $0x18] sm:$0xf]
    %v1640 = vld [vmem:[%s1632 + $0x1c] sm:$0xf]
    %s1641 = scalar_lea.vmem %s6, 1
    %v1642 = vld [vmem:[%s1641] sm:$0x1]
    %v1644 = vlaneseq
    %v1645 = vshrl.u32 %v1644, 7
    %v1646 = vsub.s32 0, %v1645
    %v1647 = vrot.slane %v1642, %v1646
    %v1657 = vunpack.c.l.b16 %v1633
    %v1658 = vunpack.c.l.b16 %v1634
    %v1659 = vunpack.c.l.b16 %v1635
    %v1660 = vunpack.c.l.b16 %v1636
    %v1661 = vunpack.c.l.b16 %v1637
    %v1662 = vunpack.c.l.b16 %v1638
    %v1663 = vunpack.c.l.b16 %v1639
    %v1664 = vunpack.c.l.b16 %v1640
    %v1665 = vpack.c.b16 %v1658, %v1657
    %v1666 = vpack.c.b16 %v1660, %v1659
    %v1667 = vpack.c.b16 %v1662, %v1661
    %v1668 = vpack.c.b16 %v1664, %v1663
    %v1674 = vsel %vm66, %v1631, 0
    %1676 = vmatprep.subr.bf16.mxu0 0
    %1677 = vmatpush1.bf16.msra.mxu0 %v1665
    %1678 = vmatprep.subr.bf16.mxu0 0
    %1679 = vmatpush1.bf16.msra.mxu0 %v1666
    %1680 = vmatprep.subr.bf16.mxu0 0
    %1681 = vmatpush1.bf16.msra.mxu0 %v1667
    %1682 = vmatprep.subr.bf16.mxu0 0
    %1683 = vmatpush1.bf16.msra.mxu0 %v1668
    %1684 = vmatprep.subr.bf16.mxu0 0
    %1685 = vmatpush1.bf16.msra.mxu0 0
    %1686 = vmatprep.subr.bf16.mxu0 0
    %1687 = vmatpush1.bf16.msra.mxu0 0
    %1688 = vmatprep.subr.bf16.mxu0 0
    %1689 = vmatpush1.bf16.msra.mxu0 0
    %1690 = vmatprep.subr.bf16.mxu0 0
    %1691 = vmatpush1.bf16.msra.mxu0 0
    %1692 = vmatprep.subr.bf16.mxu0 0
    %1693 = vmatpush1.bf16.msra.mxu0 0
    %1694 = vmatprep.subr.bf16.mxu0 0
    %1695 = vmatpush1.bf16.msra.mxu0 0
    %1696 = vmatprep.subr.bf16.mxu0 0
    %1697 = vmatpush1.bf16.msra.mxu0 0
    %1698 = vmatprep.subr.bf16.mxu0 0
    %1699 = vmatpush1.bf16.msra.mxu0 0
    %1700 = vmatprep.subr.bf16.mxu0 0
    %1701 = vmatpush1.bf16.msra.mxu0 0
    %1702 = vmatprep.subr.bf16.mxu0 0
    %1703 = vmatpush1.bf16.msra.mxu0 0
    %1704 = vmatprep.subr.bf16.mxu0 0
    %1705 = vmatpush1.bf16.msra.mxu0 0
    %1706 = vmatprep.subr.bf16.mxu0 0
    %1707 = vmatpush1.bf16.msra.mxu0 0
    %1708 = vmatprep.mubr.bf16.mxu0 0
    %1709 = vmatmul.mubr.bf16.gmra.mrb[0].mxu0 %v1674
    %v1710 = vpop.f32.mrb[0].mxu0
    %v1711 = vadd.f32 %v1647, %v1710
    %v1712 = vpop.f32.mrb[0].mxu0
    %v1713 = vpop.f32.mrb[0].mxu0
    %v1714 = vadd.f32 %v1647, %v1713
    %v1715 = vpop.f32.mrb[0].mxu0
    %1716 = vdwg.mxu0
    %v1717 = vadd.f32 %v1057, %v1711
    %v1718 = vadd.f32 %v1058, %v1714
    %s1719 = scalar_lea.vmem %s7, 1
    %v1720 = vld [vmem:[%s1719] sm:$0x1]
    %s1721 = scalar_lea.vmem %s8, 1
    %v1722 = vld [vmem:[%s1721] sm:$0x1]
    %v1723 = vsel %vm66, %v1717, 0.0
    %1724 = vadd.xlane.f32.xlu0 %v1723
    %v1725 = vpop.xlane.xlu0 %1724
    %v1726 = vsel %vm66, %v1718, 0.0
    %1727 = vadd.xlane.f32.xlu0 %v1726
    %v1728 = vpop.xlane.xlu0 %1727
    %v1729 = vmul.f32 %v1725, %v73
    %v1730 = vmul.f32 %v1728, %v73
    %v1731 = vsub.f32 %v1717, %v1729
    %v1732 = vsub.f32 %v1718, %v1730
    %v1733 = vmul.f32 %v1731, %v1731
    %v1734 = vmul.f32 %v1732, %v1732
    %v1735 = vsel %vm66, %v1733, 0.0
    %1736 = vadd.xlane.f32.xlu0 %v1735
    %v1737 = vpop.xlane.xlu0 %1736
    %v1738 = vsel %vm66, %v1734, 0.0
    %1739 = vadd.xlane.f32.xlu0 %v1738
    %v1740 = vpop.xlane.xlu0 %1739
    %v1741 = vmul.f32 %v1737, %v73
    %v1742 = vmul.f32 %v1740, %v73
    %v1743 = vadd.f32 %v1741, 1e-05
    %v1744 = vadd.f32 %v1742, 1e-05
    %v1745 = vrsqrt.pop %v1743
    %v1746 = vrsqrt.pop %v1744
    %v1747 = vmul.f32 %v1731, %v1745
    %v1748 = vmul.f32 %v1732, %v1746
    %v1750 = vlaneseq
    %v1751 = vshrl.u32 %v1750, 7
    %v1752 = vsub.s32 0, %v1751
    %v1753 = vrot.slane %v1720, %v1752
    %v1755 = vmul.f32 %v1747, %v1753
    %v1756 = vmul.f32 %v1748, %v1753
    %v1758 = vlaneseq
    %v1759 = vshrl.u32 %v1758, 7
    %v1760 = vsub.s32 0, %v1759
    %v1761 = vrot.slane %v1722, %v1760
    %v1763 = vadd.f32 %v1755, %v1761
    %v1764 = vadd.f32 %v1756, %v1761
    %v1765 = vpack.c.bf16 %v1764, %v1763
    %s1766 = scalar_lea.vmem %s9, 64
    %v1767 = vld [vmem:[%s1766] sm:$0xff]
    %v1768 = vld [vmem:[%s1766 + $0x8] sm:$0xff]
    %v1769 = vld [vmem:[%s1766 + $0x10] sm:$0xff]
    %v1770 = vld [vmem:[%s1766 + $0x18] sm:$0xff]
    %v1771 = vld [vmem:[%s1766 + $0x20] sm:$0xff]
    %v1772 = vld [vmem:[%s1766 + $0x28] sm:$0xff]
    %v1773 = vld [vmem:[%s1766 + $0x30] sm:$0xff]
    %v1774 = vld [vmem:[%s1766 + $0x38] sm:$0xff]
    %s1775 = scalar_lea.vmem %s10, 2
    %v1776 = vld [vmem:[%s1775] sm:$0x3]
    %v1778 = vlaneseq
    %v1779 = vshrl.u32 %v1778, 7
    %v1780 = vsub.s32 0, %v1779
    %v1781 = vrot.slane %v1776, %v1780
    %v1782 = vlaneseq
    %v1783 = vshrl.u32 %v1782, 7
    %v1784 = vsub.s32 1, %v1783
    %v1785 = vrot.slane %v1776, %v1784
    %v1796 = vunpack.c.l.b16 %v1767
    %v1797 = vunpack.c.h.b16 %v1767
    %v1798 = vunpack.c.l.b16 %v1768
    %v1799 = vunpack.c.h.b16 %v1768
    %v1800 = vunpack.c.l.b16 %v1769
    %v1801 = vunpack.c.h.b16 %v1769
    %v1802 = vunpack.c.l.b16 %v1770
    %v1803 = vunpack.c.h.b16 %v1770
    %v1804 = vunpack.c.l.b16 %v1771
    %v1805 = vunpack.c.h.b16 %v1771
    %v1806 = vunpack.c.l.b16 %v1772
    %v1807 = vunpack.c.h.b16 %v1772
    %v1808 = vunpack.c.l.b16 %v1773
    %v1809 = vunpack.c.h.b16 %v1773
    %v1810 = vunpack.c.l.b16 %v1774
    %v1811 = vunpack.c.h.b16 %v1774
    %v1812 = vpack.c.b16 %v1798, %v1796
    %v1813 = vpack.c.b16 %v1799, %v1797
    %v1814 = vpack.c.b16 %v1802, %v1800
    %v1815 = vpack.c.b16 %v1803, %v1801
    %v1816 = vpack.c.b16 %v1806, %v1804
    %v1817 = vpack.c.b16 %v1807, %v1805
    %v1818 = vpack.c.b16 %v1810, %v1808
    %v1819 = vpack.c.b16 %v1811, %v1809
    %v1829 = vsel %vm66, %v1765, 0
    %1831 = vmatprep.subr.bf16.mxu0 %v1813
    %1832 = vmatpush1.bf16.msra.mxu0 %v1812
    %1833 = vmatprep.subr.bf16.mxu0 %v1815
    %1834 = vmatpush1.bf16.msra.mxu0 %v1814
    %1835 = vmatprep.subr.bf16.mxu0 %v1817
    %1836 = vmatpush1.bf16.msra.mxu0 %v1816
    %1837 = vmatprep.subr.bf16.mxu0 %v1819
    %1838 = vmatpush1.bf16.msra.mxu0 %v1818
    %1839 = vmatprep.subr.bf16.mxu0 0
    %1840 = vmatpush1.bf16.msra.mxu0 0
    %1841 = vmatprep.subr.bf16.mxu0 0
    %1842 = vmatpush1.bf16.msra.mxu0 0
    %1843 = vmatprep.subr.bf16.mxu0 0
    %1844 = vmatpush1.bf16.msra.mxu0 0
    %1845 = vmatprep.subr.bf16.mxu0 0
    %1846 = vmatpush1.bf16.msra.mxu0 0
    %1847 = vmatprep.subr.bf16.mxu0 0
    %1848 = vmatpush1.bf16.msra.mxu0 0
    %1849 = vmatprep.subr.bf16.mxu0 0
    %1850 = vmatpush1.bf16.msra.mxu0 0
    %1851 = vmatprep.subr.bf16.mxu0 0
    %1852 = vmatpush1.bf16.msra.mxu0 0
    %1853 = vmatprep.subr.bf16.mxu0 0
    %1854 = vmatpush1.bf16.msra.mxu0 0
    %1855 = vmatprep.subr.bf16.mxu0 0
    %1856 = vmatpush1.bf16.msra.mxu0 0
    %1857 = vmatprep.subr.bf16.mxu0 0
    %1858 = vmatpush1.bf16.msra.mxu0 0
    %1859 = vmatprep.subr.bf16.mxu0 0
    %1860 = vmatpush1.bf16.msra.mxu0 0
    %1861 = vmatprep.subr.bf16.mxu0 0
    %1862 = vmatpush1.bf16.msra.mxu0 0
    %1863 = vmatprep.mubr.bf16.mxu0 0
    %1864 = vmatmul.mubr.bf16.gmra.mrb[0].mxu0 %v1829
    %v1865 = vpop.f32.mrb[0].mxu0
    %v1866 = vadd.f32 %v1781, %v1865
    %v1867 = vpop.f32.mrb[0].mxu0
    %v1868 = vadd.f32 %v1785, %v1867
    %v1869 = vpop.f32.mrb[0].mxu0
    %v1870 = vadd.f32 %v1781, %v1869
    %v1871 = vpop.f32.mrb[0].mxu0
    %v1872 = vadd.f32 %v1785, %v1871
    %1873 = vdwg.mxu0
    %v1874 = vmax.f32 %v1866, 0.0
    %v1875 = vmax.f32 %v1868, 0.0
    %v1876 = vmax.f32 %v1870, 0.0
    %v1877 = vmax.f32 %v1872, 0.0
    %v1878 = vpack.c.bf16 %v1876, %v1874
    %v1879 = vpack.c.bf16 %v1877, %v1875
    %s1880 = scalar_lea.vmem %s11, 128
    %v1881 = vld [vmem:[%s1880] sm:$0xf]
    %v1882 = vld [vmem:[%s1880 + $0x4] sm:$0xf]
    %v1883 = vld [vmem:[%s1880 + $0x8] sm:$0xf]
    %v1884 = vld [vmem:[%s1880 + $0xc] sm:$0xf]
    %v1885 = vld [vmem:[%s1880 + $0x10] sm:$0xf]
    %v1886 = vld [vmem:[%s1880 + $0x14] sm:$0xf]
    %v1887 = vld [vmem:[%s1880 + $0x18] sm:$0xf]
    %v1888 = vld [vmem:[%s1880 + $0x1c] sm:$0xf]
    %v1889 = vld [vmem:[%s1880 + $0x20] sm:$0xf]
    %v1890 = vld [vmem:[%s1880 + $0x24] sm:$0xf]
    %v1891 = vld [vmem:[%s1880 + $0x28] sm:$0xf]
    %v1892 = vld [vmem:[%s1880 + $0x2c] sm:$0xf]
    %v1893 = vld [vmem:[%s1880 + $0x30] sm:$0xf]
    %v1894 = vld [vmem:[%s1880 + $0x34] sm:$0xf]
    %v1895 = vld [vmem:[%s1880 + $0x38] sm:$0xf]
    %v1896 = vld [vmem:[%s1880 + $0x3c] sm:$0xf]
    %v1897 = vld [vmem:[%s1880 + $0x40] sm:$0xf]
    %v1898 = vld [vmem:[%s1880 + $0x44] sm:$0xf]
    %v1899 = vld [vmem:[%s1880 + $0x48] sm:$0xf]
    %v1900 = vld [vmem:[%s1880 + $0x4c] sm:$0xf]
    %v1901 = vld [vmem:[%s1880 + $0x50] sm:$0xf]
    %v1902 = vld [vmem:[%s1880 + $0x54] sm:$0xf]
    %v1903 = vld [vmem:[%s1880 + $0x58] sm:$0xf]
    %v1904 = vld [vmem:[%s1880 + $0x5c] sm:$0xf]
    %v1905 = vld [vmem:[%s1880 + $0x60] sm:$0xf]
    %v1906 = vld [vmem:[%s1880 + $0x64] sm:$0xf]
    %v1907 = vld [vmem:[%s1880 + $0x68] sm:$0xf]
    %v1908 = vld [vmem:[%s1880 + $0x6c] sm:$0xf]
    %v1909 = vld [vmem:[%s1880 + $0x70] sm:$0xf]
    %v1910 = vld [vmem:[%s1880 + $0x74] sm:$0xf]
    %v1911 = vld [vmem:[%s1880 + $0x78] sm:$0xf]
    %v1912 = vld [vmem:[%s1880 + $0x7c] sm:$0xf]
    %s1913 = scalar_lea.vmem %s12, 1
    %v1914 = vld [vmem:[%s1913] sm:$0x1]
    %v1916 = vlaneseq
    %v1917 = vshrl.u32 %v1916, 7
    %v1918 = vsub.s32 0, %v1917
    %v1919 = vrot.slane %v1914, %v1918
    %v1953 = vunpack.c.l.b16 %v1881
    %v1954 = vunpack.c.l.b16 %v1882
    %v1955 = vunpack.c.l.b16 %v1883
    %v1956 = vunpack.c.l.b16 %v1884
    %v1957 = vunpack.c.l.b16 %v1885
    %v1958 = vunpack.c.l.b16 %v1886
    %v1959 = vunpack.c.l.b16 %v1887
    %v1960 = vunpack.c.l.b16 %v1888
    %v1961 = vunpack.c.l.b16 %v1889
    %v1962 = vunpack.c.l.b16 %v1890
    %v1963 = vunpack.c.l.b16 %v1891
    %v1964 = vunpack.c.l.b16 %v1892
    %v1965 = vunpack.c.l.b16 %v1893
    %v1966 = vunpack.c.l.b16 %v1894
    %v1967 = vunpack.c.l.b16 %v1895
    %v1968 = vunpack.c.l.b16 %v1896
    %v1969 = vunpack.c.l.b16 %v1897
    %v1970 = vunpack.c.l.b16 %v1898
    %v1971 = vunpack.c.l.b16 %v1899
    %v1972 = vunpack.c.l.b16 %v1900
    %v1973 = vunpack.c.l.b16 %v1901
    %v1974 = vunpack.c.l.b16 %v1902
    %v1975 = vunpack.c.l.b16 %v1903
    %v1976 = vunpack.c.l.b16 %v1904
    %v1977 = vunpack.c.l.b16 %v1905
    %v1978 = vunpack.c.l.b16 %v1906
    %v1979 = vunpack.c.l.b16 %v1907
    %v1980 = vunpack.c.l.b16 %v1908
    %v1981 = vunpack.c.l.b16 %v1909
    %v1982 = vunpack.c.l.b16 %v1910
    %v1983 = vunpack.c.l.b16 %v1911
    %v1984 = vunpack.c.l.b16 %v1912
    %v1985 = vpack.c.b16 %v1954, %v1953
    %v1986 = vpack.c.b16 %v1956, %v1955
    %v1987 = vpack.c.b16 %v1958, %v1957
    %v1988 = vpack.c.b16 %v1960, %v1959
    %v1989 = vpack.c.b16 %v1962, %v1961
    %v1990 = vpack.c.b16 %v1964, %v1963
    %v1991 = vpack.c.b16 %v1966, %v1965
    %v1992 = vpack.c.b16 %v1968, %v1967
    %v1993 = vpack.c.b16 %v1970, %v1969
    %v1994 = vpack.c.b16 %v1972, %v1971
    %v1995 = vpack.c.b16 %v1974, %v1973
    %v1996 = vpack.c.b16 %v1976, %v1975
    %v1997 = vpack.c.b16 %v1978, %v1977
    %v1998 = vpack.c.b16 %v1980, %v1979
    %v1999 = vpack.c.b16 %v1982, %v1981
    %v2000 = vpack.c.b16 %v1984, %v1983
    %2017 = vmatprep.subr.bf16.mxu0 0
    %2018 = vmatpush1.bf16.msra.mxu0 %v1985
    %2019 = vmatprep.subr.bf16.mxu0 0
    %2020 = vmatpush1.bf16.msra.mxu0 %v1986
    %2021 = vmatprep.subr.bf16.mxu0 0
    %2022 = vmatpush1.bf16.msra.mxu0 %v1987
    %2023 = vmatprep.subr.bf16.mxu0 0
    %2024 = vmatpush1.bf16.msra.mxu0 %v1988
    %2025 = vmatprep.subr.bf16.mxu0 0
    %2026 = vmatpush1.bf16.msra.mxu0 %v1989
    %2027 = vmatprep.subr.bf16.mxu0 0
    %2028 = vmatpush1.bf16.msra.mxu0 %v1990
    %2029 = vmatprep.subr.bf16.mxu0 0
    %2030 = vmatpush1.bf16.msra.mxu0 %v1991
    %2031 = vmatprep.subr.bf16.mxu0 0
    %2032 = vmatpush1.bf16.msra.mxu0 %v1992
    %2033 = vmatprep.subr.bf16.mxu0 0
    %2034 = vmatpush1.bf16.msra.mxu0 %v1993
    %2035 = vmatprep.subr.bf16.mxu0 0
    %2036 = vmatpush1.bf16.msra.mxu0 %v1994
    %2037 = vmatprep.subr.bf16.mxu0 0
    %2038 = vmatpush1.bf16.msra.mxu0 %v1995
    %2039 = vmatprep.subr.bf16.mxu0 0
    %2040 = vmatpush1.bf16.msra.mxu0 %v1996
    %2041 = vmatprep.subr.bf16.mxu0 0
    %2042 = vmatpush1.bf16.msra.mxu0 %v1997
    %2043 = vmatprep.subr.bf16.mxu0 0
    %2044 = vmatpush1.bf16.msra.mxu0 %v1998
    %2045 = vmatprep.subr.bf16.mxu0 0
    %2046 = vmatpush1.bf16.msra.mxu0 %v1999
    %2047 = vmatprep.subr.bf16.mxu0 0
    %2048 = vmatpush1.bf16.msra.mxu0 %v2000
    %2049 = vmatprep.mubr.bf16.mxu0 %v1879
    %2050 = vmatmul.mubr.bf16.gmra.mrb[0].mxu0 %v1878
    %v2051 = vpop.f32.mrb[0].mxu0
    %v2052 = vadd.f32 %v1919, %v2051
    %v2053 = vpop.f32.mrb[0].mxu0
    %v2054 = vpop.f32.mrb[0].mxu0
    %v2055 = vadd.f32 %v1919, %v2054
    %v2056 = vpop.f32.mrb[0].mxu0
    %2057 = vdwg.mxu0
    %v2058 = vadd.f32 %v1717, %v2052
    %v2059 = vadd.f32 %v1718, %v2055
    %v2060 = vld [vmem:[%s13] sm:$0x1]
    %v2061 = vld [vmem:[%s14] sm:$0x1]
    %v2062 = vsel %vm66, %v2058, 0.0
    %2063 = vadd.xlane.f32.xlu0 %v2062
    %v2064 = vpop.xlane.xlu0 %2063
    %v2065 = vsel %vm66, %v2059, 0.0
    %2066 = vadd.xlane.f32.xlu0 %v2065
    %v2067 = vpop.xlane.xlu0 %2066
    %v2068 = vmul.f32 %v2064, %v73
    %v2069 = vmul.f32 %v2067, %v73
    %v2070 = vsub.f32 %v2058, %v2068
    %v2071 = vsub.f32 %v2059, %v2069
    %v2072 = vmul.f32 %v2070, %v2070
    %v2073 = vmul.f32 %v2071, %v2071
    %v2074 = vsel %vm66, %v2072, 0.0
    %2075 = vadd.xlane.f32.xlu0 %v2074
    %v2076 = vpop.xlane.xlu0 %2075
    %v2077 = vsel %vm66, %v2073, 0.0
    %2078 = vadd.xlane.f32.xlu0 %v2077
    %v2079 = vpop.xlane.xlu0 %2078
    %v2080 = vmul.f32 %v2076, %v73
    %v2081 = vmul.f32 %v2079, %v73
    %v2082 = vadd.f32 %v2080, 1e-05
    %v2083 = vadd.f32 %v2081, 1e-05
    %v2084 = vrsqrt.pop %v2082
    %v2085 = vrsqrt.pop %v2083
    %v2086 = vmul.f32 %v2070, %v2084
    %v2087 = vmul.f32 %v2071, %v2085
    %v2089 = vlaneseq
    %v2090 = vshrl.u32 %v2089, 7
    %v2091 = vsub.s32 0, %v2090
    %v2092 = vrot.slane %v2060, %v2091
    %v2094 = vmul.f32 %v2086, %v2092
    %v2095 = vmul.f32 %v2087, %v2092
    %v2097 = vlaneseq
    %v2098 = vshrl.u32 %v2097, 7
    %v2099 = vsub.s32 0, %v2098
    %v2100 = vrot.slane %v2061, %v2099
    %v2102 = vadd.f32 %v2094, %v2100
    %v2103 = vadd.f32 %v2095, %v2100
    %v2104 = vpack.c.bf16 %v2103, %v2102
    %v2105 = vld [vmem:[%s15] sm:$0xf]
    %v2106 = vld [vmem:[%s15 + $0x4] sm:$0xf]
    %v2107 = vld [vmem:[%s15 + $0x8] sm:$0xf]
    %v2108 = vld [vmem:[%s15 + $0xc] sm:$0xf]
    %v2109 = vld [vmem:[%s15 + $0x10] sm:$0xf]
    %v2110 = vld [vmem:[%s15 + $0x14] sm:$0xf]
    %v2111 = vld [vmem:[%s15 + $0x18] sm:$0xf]
    %v2112 = vld [vmem:[%s15 + $0x1c] sm:$0xf]
    %v2113 = vld [vmem:[%s16] sm:$0x1]
    %v2115 = vlaneseq
    %v2116 = vshrl.u32 %v2115, 7
    %v2117 = vsub.s32 0, %v2116
    %v2118 = vrot.slane %v2113, %v2117
    %v2128 = vunpack.c.l.b16 %v2105
    %v2129 = vunpack.c.l.b16 %v2106
    %v2130 = vunpack.c.l.b16 %v2107
    %v2131 = vunpack.c.l.b16 %v2108
    %v2132 = vunpack.c.l.b16 %v2109
    %v2133 = vunpack.c.l.b16 %v2110
    %v2134 = vunpack.c.l.b16 %v2111
    %v2135 = vunpack.c.l.b16 %v2112
    %v2136 = vpack.c.b16 %v2129, %v2128
    %v2137 = vpack.c.b16 %v2131, %v2130
    %v2138 = vpack.c.b16 %v2133, %v2132
    %v2139 = vpack.c.b16 %v2135, %v2134
    %v2145 = vsel %vm66, %v2104, 0
    %2147 = vmatprep.subr.bf16.mxu0 0
    %2148 = vmatpush1.bf16.msra.mxu0 %v2136
    %2149 = vmatprep.subr.bf16.mxu0 0
    %2150 = vmatpush1.bf16.msra.mxu0 %v2137
    %2151 = vmatprep.subr.bf16.mxu0 0
    %2152 = vmatpush1.bf16.msra.mxu0 %v2138
    %2153 = vmatprep.subr.bf16.mxu0 0
    %2154 = vmatpush1.bf16.msra.mxu0 %v2139
    %2155 = vmatprep.subr.bf16.mxu0 0
    %2156 = vmatpush1.bf16.msra.mxu0 0
    %2157 = vmatprep.subr.bf16.mxu0 0
    %2158 = vmatpush1.bf16.msra.mxu0 0
    %2159 = vmatprep.subr.bf16.mxu0 0
    %2160 = vmatpush1.bf16.msra.mxu0 0
    %2161 = vmatprep.subr.bf16.mxu0 0
    %2162 = vmatpush1.bf16.msra.mxu0 0
    %2163 = vmatprep.subr.bf16.mxu0 0
    %2164 = vmatpush1.bf16.msra.mxu0 0
    %2165 = vmatprep.subr.bf16.mxu0 0
    %2166 = vmatpush1.bf16.msra.mxu0 0
    %2167 = vmatprep.subr.bf16.mxu0 0
    %2168 = vmatpush1.bf16.msra.mxu0 0
    %2169 = vmatprep.subr.bf16.mxu0 0
    %2170 = vmatpush1.bf16.msra.mxu0 0
    %2171 = vmatprep.subr.bf16.mxu0 0
    %2172 = vmatpush1.bf16.msra.mxu0 0
    %2173 = vmatprep.subr.bf16.mxu0 0
    %2174 = vmatpush1.bf16.msra.mxu0 0
    %2175 = vmatprep.subr.bf16.mxu0 0
    %2176 = vmatpush1.bf16.msra.mxu0 0
    %2177 = vmatprep.subr.bf16.mxu0 0
    %2178 = vmatpush1.bf16.msra.mxu0 0
    %2179 = vmatprep.mubr.bf16.mxu0 0
    %2180 = vmatmul.mubr.bf16.gmra.mrb[0].mxu0 %v2145
    %v2181 = vpop.f32.mrb[0].mxu0
    %v2182 = vadd.f32 %v2118, %v2181
    %v2183 = vpop.f32.mrb[0].mxu0
    %v2184 = vpop.f32.mrb[0].mxu0
    %v2185 = vadd.f32 %v2118, %v2184
    %v2186 = vpop.f32.mrb[0].mxu0
    %2187 = vdwg.mxu0
    %2188 = vst [vmem:[#allocation2] sm:$0xff] %v2182
    %2189 = vst [vmem:[#allocation2 + $0x8] sm:$0xff] %v2185
    // Predicated region
    $region70: #{gpt2_forward.1} parent=1 // pred_check
      _
    $region71: #{gpt2_forward.1} parent=1 // pred_check_branch
      %2191 = sbr.rel (0) target = $region73
    $region72: #{gpt2_forward.1} parent=1 // pred_region
      %s2193 = ssub.s32 256, 256
      %2194 = vsyncadd [#allocation3], %s2193
      %s2195 = sshll.u32 [#allocation2], 4
      %s2196 = int_to_ptr.vmem [resolvable:$true] %s2195
      %2201 = dma.vmem_to_hbm [thread:$0]  %s2196, 256, %s17, [#allocation3], 128, 128, 8
    $region73: #{gpt2_forward.1} parent=1 // pred_fallthru
      _
    // Predicated region
    $region74: #{gpt2_forward.1} parent=1 // pred_check
      _
    $region75: #{gpt2_forward.1} parent=1 // pred_check_branch
      %2203 = sbr.rel (0) target = $region77
    $region76: #{gpt2_forward.1} parent=1 // pred_region
      %2204 = dma.done [#allocation3], 256
    $region77: #{gpt2_forward.1} parent=1 // pred_fallthru
      _
    %2205 = vsyncpa [#allocation3], 1

</llo_original>
